<compile_context>
chip_gen: v7x
topology: tpu7x:2x2x1
jax: 0.10.0
libtpu: 0.0.40
codegen_flags: <defaults>
</compile_context>

<pallas_src>
import math
import jax
import jax.numpy as jnp
from jax.experimental import pallas as pl
from jax.experimental.pallas import tpu as pltpu

# ---- module config (transformerBlock(hidden, attn_heads, feed_forward_hidden, ...)) ----
B, S, H = 2, 8, 32          # batch, seq, hidden (d_model)
HEADS = 4
D_K = H // HEADS
D_FF = 64                   # feed_forward_hidden
BITS = 8
EPS = 1e-6                  # addNorm eps


# ----------------------------- in-kernel helpers ---------------------------------
def _quant_params(amax, bits):
    # quantize.scaling: qmax = 2^bits - 1, qmin = -2^bits, scale = 2*max|x|/(qmax-qmin)
    qmax = 2.0 ** bits - 1.0
    qmin = -(2.0 ** bits)
    scale = 2.0 * amax / (qmax - qmin)
    scale = jnp.where(scale == 0.0, jnp.float32(1e-5), scale)
    return qmin, qmax, scale


def _quant_apply(x, qmin, qmax, scale):
    # quantize.apply (forward)
    return jnp.clip(jnp.round(x / scale), qmin, qmax) * scale


def _quantize(x, bits):
    # single full-tensor reduction (max of abs) instead of separate max+min
    qmin, qmax, scale = _quant_params(jnp.max(jnp.abs(x)), bits)
    return _quant_apply(x, qmin, qmax, scale)


def _addnorm_normalize(x, a2, b2):
    # addNorm normalization: mean / UNBIASED std over last dim, eps added to std.
    n = x.shape[-1]
    mean = jnp.sum(x, axis=-1, keepdims=True) * (1.0 / n)
    xc = x - mean
    var = jnp.sum(xc * xc, axis=-1, keepdims=True) * (1.0 / (n - 1))
    std = jnp.sqrt(var)
    inv = pl.reciprocal(std + EPS, approx=True)        # EUP slot, no f32 divide
    return a2 * xc * inv + b2


def _softmax_lastdim(x):
    m = jnp.max(x, axis=-1, keepdims=True)
    e = jnp.exp(x - m)
    return e * pl.reciprocal(jnp.sum(e, axis=-1, keepdims=True), approx=True)


def _gelu(x):
    # feedForwardNetwork.gelu: tanh approximation
    c = math.sqrt(2.0 / math.pi)
    return 0.5 * x * (1.0 + jnp.tanh(c * (x + 0.044715 * x ** 3)))


# ----------------------------------- kernel --------------------------------------
def transformer_block_kernel(
    x_ref, maskb_ref,
    wqkv_ref, bqkv_ref, wo_ref, bo_ref,
    a1_ref, b1_ref, a2_ref, b2_ref,
    w1_ref, bw1_ref, w2_ref, bw2_ref,
    out_ref,
):
    x = x_ref[...]                 # (B*S, H) — activations stay 2-D throughout
    mask_bias = maskb_ref[...]     # (B, S, S): 0 where attend, -1e9 where masked

    # ------------- input_sublayer: x + att(norm(x), norm(x), norm(x), mask) -------
    nx = _addnorm_normalize(x, a1_ref[...], b1_ref[...])

    # query == key == value == nx, so one fake-quant serves all three
    qx = _quantize(nx, BITS)

    # fused Q/K/V projection: single (B*S,H) @ (H,3H) MXU matmul + one bias add
    qkv = jnp.dot(qx, wqkv_ref[...], preferred_element_type=jnp.float32) + bqkv_ref[...]

    inv_sqrt_dk = 1.0 / math.sqrt(D_K)
    wo = wo_ref[...]               # (H, H), sliced per head below

    head_outs = []
    amax = jnp.float32(0.0)
    for hh in range(HEADS):        # static unrolled loop over heads
        lo = hh * D_K
        q_h = qkv[:, lo:lo + D_K].reshape(B, S, D_K)
        k_h = qkv[:, H + lo:H + lo + D_K].reshape(B, S, D_K)
        v_h = qkv[:, 2 * H + lo:2 * H + lo + D_K].reshape(B, S, D_K)

        sc = jnp.einsum('bqd,bkd->bqk', q_h, k_h,
                        preferred_element_type=jnp.float32) * inv_sqrt_dk
        sc = sc + mask_bias                      # hoisted additive mask (no select)
        pr = _softmax_lastdim(sc)
        # NOTE: reference computes quantize(probs) but never uses it (dead code);
        #       p_attn = dropout(probs) == probs in eval mode.
        o_h = jnp.einsum('bqk,bkd->bqd', pr, v_h,
                         preferred_element_type=jnp.float32)  # (B,S,D_K)
        head_outs.append(o_h)
        amax = jnp.maximum(amax, jnp.max(jnp.abs(o_h)))

    # Global (all-heads) fake-quant of the attention output, folded into the output
    # projection without a concatenate:
    #   concat_h(quant(o_h)) @ Wo  ==  sum_h quant(o_h) @ Wo[h*D_K:(h+1)*D_K, :]
    qmin, qmax, o_scale = _quant_params(amax, BITS)
    att = None
    for hh in range(HEADS):
        oq = _quant_apply(head_outs[hh], qmin, qmax, o_scale).reshape(B * S, D_K)
        contrib = jnp.dot(oq, wo[hh * D_K:(hh + 1) * D_K, :],
                          preferred_element_type=jnp.float32)
        att = contrib if att is None else att + contrib
    att = att + bo_ref[...]

    x1 = x + att                                  # residual (dropout identity)

    # ------------- output_sublayer: x1 + ffn(norm(x1)) ----------------------------
    nx1 = _addnorm_normalize(x1, a2_ref[...], b2_ref[...])
    fx = _quantize(nx1, BITS)                     # quantize FFN input
    t = jnp.dot(fx, w1_ref[...], preferred_element_type=jnp.float32) + bw1_ref[...]
    t = _gelu(t)                                  # dropout identity
    t2 = jnp.dot(t, w2_ref[...], preferred_element_type=jnp.float32) + bw2_ref[...]
    t2 = _quantize(t2, BITS)                      # quantize FFN output

    # final transformerBlock dropout is identity in eval mode
    out_ref[...] = x1 + t2


# --------------------------------- wrapper ----------------------------------------
def transformer_block(x, mask, params):
    Bx, Sx, Hx = x.shape
    x2d = x.reshape(Bx * Sx, Hx)                       # flatten once, outside kernel
    mask_bias = (mask - 1.0) * 1e9                     # 0 = keep, -1e9 = masked out
    # Fuse Q/K/V weights & biases once on the host side (one MXU matmul in-kernel).
    wqkv = jnp.concatenate([params['wq'], params['wk'], params['wv']], axis=1)  # (H,3H)
    bqkv = jnp.concatenate([params['bq'], params['bk'], params['bv']], axis=1)  # (1,3H)

    args = (
        x2d, mask_bias,
        wqkv, bqkv, params['wo'], params['bo'],
        params['a1'], params['b1'], params['a2'], params['b2'],
        params['w1'], params['bw1'], params['w2'], params['bw2'],
    )
    vmem = pl.BlockSpec(memory_space=pltpu.MemorySpace.VMEM)
    out2d = pl.pallas_call(
        transformer_block_kernel,
        out_shape=jax.ShapeDtypeStruct((Bx * Sx, Hx), jnp.float32),
        in_specs=[vmem] * len(args),
        out_specs=vmem,
    )(*args)
    return out2d.reshape(Bx, Sx, Hx)


# ------------------------------ parameter init -------------------------------------
def init_params(key):
    def lin_init(k, fan_in, fan_out):
        bound = 1.0 / math.sqrt(fan_in)
        kw, kb = jax.random.split(k)
        w = jax.random.uniform(kw, (fan_in, fan_out), jnp.float32, -bound, bound)
        b = jax.random.uniform(kb, (1, fan_out), jnp.float32, -bound, bound)
        return w, b

    ks = jax.random.split(key, 6)
    wq, bq = lin_init(ks[0], H, H)
    wk, bk = lin_init(ks[1], H, H)
    wv, bv = lin_init(ks[2], H, H)
    wo, bo = lin_init(ks[3], H, H)
    w1, bw1 = lin_init(ks[4], H, D_FF)
    w2, bw2 = lin_init(ks[5], D_FF, H)
    return dict(
        wq=wq, bq=bq, wk=wk, bk=bk, wv=wv, bv=bv, wo=wo, bo=bo,
        a1=jnp.ones((1, H), jnp.float32), b1=jnp.zeros((1, H), jnp.float32),
        a2=jnp.ones((1, H), jnp.float32), b2=jnp.zeros((1, H), jnp.float32),
        w1=w1, bw1=bw1, w2=w2, bw2=bw2,
    )


if __name__ == "__main__":
    key = jax.random.PRNGKey(0)
    k_x, k_p = jax.random.split(key)
    x = jax.random.normal(k_x, (B, S, H), jnp.float32)
    # causal mask (1 = attend, 0 = masked), broadcast over heads, shape (B, S, S)
    mask = jnp.repeat(jnp.tril(jnp.ones((S, S), jnp.float32))[None], B, axis=0)
    params = init_params(k_p)

    out = transformer_block(x, mask, params)
    jax.block_until_ready(out)
    assert out.shape == (B, S, H)
    print("KERNEL_OK")
</pallas_src>

<mosaic_0001>
module attributes {stable_mosaic.version = 11 : i64} {
  func.func @transformer_block_kernel(%arg0: memref<16x32xf32, #tpu.memory_space<vmem>>, %arg1: memref<2x8x8xf32, #tpu.memory_space<vmem>>, %arg2: memref<32x96xf32, #tpu.memory_space<vmem>>, %arg3: memref<1x96xf32, #tpu.memory_space<vmem>>, %arg4: memref<32x32xf32, #tpu.memory_space<vmem>>, %arg5: memref<1x32xf32, #tpu.memory_space<vmem>>, %arg6: memref<1x32xf32, #tpu.memory_space<vmem>>, %arg7: memref<1x32xf32, #tpu.memory_space<vmem>>, %arg8: memref<1x32xf32, #tpu.memory_space<vmem>>, %arg9: memref<1x32xf32, #tpu.memory_space<vmem>>, %arg10: memref<32x64xf32, #tpu.memory_space<vmem>>, %arg11: memref<1x64xf32, #tpu.memory_space<vmem>>, %arg12: memref<64x32xf32, #tpu.memory_space<vmem>>, %arg13: memref<1x32xf32, #tpu.memory_space<vmem>>, %arg14: memref<16x32xf32, #tpu.memory_space<vmem>>) attributes {dimension_semantics = [], scalar_prefetch = 0 : i64, scratch_operands = 0 : i64, tpu.core_type = #tpu.core_type<tc>} {
    %c0 = arith.constant 0 : index
    %c0_0 = arith.constant 0 : index
    %0 = vector.load %arg0[%c0, %c0_0] : memref<16x32xf32, #tpu.memory_space<vmem>>, vector<16x32xf32>
    %c0_1 = arith.constant 0 : index
    %c0_2 = arith.constant 0 : index
    %c0_3 = arith.constant 0 : index
    %1 = vector.load %arg1[%c0_1, %c0_2, %c0_3] : memref<2x8x8xf32, #tpu.memory_space<vmem>>, vector<2x8x8xf32>
    %c0_4 = arith.constant 0 : index
    %c0_5 = arith.constant 0 : index
    %2 = vector.load %arg6[%c0_4, %c0_5] : memref<1x32xf32, #tpu.memory_space<vmem>>, vector<1x32xf32>
    %c0_6 = arith.constant 0 : index
    %c0_7 = arith.constant 0 : index
    %3 = vector.load %arg7[%c0_6, %c0_7] : memref<1x32xf32, #tpu.memory_space<vmem>>, vector<1x32xf32>
    %cst = arith.constant dense<0.000000e+00> : vector<16xf32>
    %4 = vector.multi_reduction <add>, %0, %cst [1] : vector<16x32xf32> to vector<16xf32>
    %5 = vector.shape_cast %4 : vector<16xf32> to vector<16x1xf32>
    %cst_8 = arith.constant 3.125000e-02 : f32
    %6 = vector.broadcast %cst_8 : f32 to vector<16x1xf32>
    %7 = arith.mulf %5, %6 : vector<16x1xf32>
    %8 = vector.broadcast %7 : vector<16x1xf32> to vector<16x32xf32>
    %9 = arith.subf %0, %8 : vector<16x32xf32>
    %10 = arith.mulf %9, %9 : vector<16x32xf32>
    %cst_9 = arith.constant dense<0.000000e+00> : vector<16xf32>
    %11 = vector.multi_reduction <add>, %10, %cst_9 [1] : vector<16x32xf32> to vector<16xf32>
    %12 = vector.shape_cast %11 : vector<16xf32> to vector<16x1xf32>
    %cst_10 = arith.constant 0.0322580636 : f32
    %13 = vector.broadcast %cst_10 : f32 to vector<16x1xf32>
    %14 = arith.mulf %12, %13 : vector<16x1xf32>
    %15 = math.sqrt %14 : vector<16x1xf32>
    %cst_11 = arith.constant 9.99999997E-7 : f32
    %16 = vector.broadcast %cst_11 : f32 to vector<16x1xf32>
    %17 = arith.addf %15, %16 : vector<16x1xf32>
    %18 = tpu.reciprocal %17 {approx = true} : vector<16x1xf32> -> vector<16x1xf32>
    %19 = vector.broadcast %2 : vector<1x32xf32> to vector<16x32xf32>
    %20 = arith.mulf %19, %9 : vector<16x32xf32>
    %21 = vector.broadcast %18 : vector<16x1xf32> to vector<16x32xf32>
    %22 = arith.mulf %20, %21 : vector<16x32xf32>
    %23 = vector.broadcast %3 : vector<1x32xf32> to vector<16x32xf32>
    %24 = arith.addf %22, %23 : vector<16x32xf32>
    %25 = math.absf %24 : vector<16x32xf32>
    %26 = vector.shape_cast %25 : vector<16x32xf32> to vector<1x16x32xf32>
    %cst_12 = arith.constant dense<0xFF800000> : vector<1xf32>
    %27 = vector.multi_reduction <maximumf>, %26, %cst_12 [1, 2] : vector<1x16x32xf32> to vector<1xf32>
    %28 = vector.shape_cast %27 : vector<1xf32> to vector<1x1x1xf32>
    %29 = vector.extract %28[0, 0, 0] : f32 from vector<1x1x1xf32>
    %cst_13 = arith.constant 2.000000e+00 : f32
    %30 = arith.mulf %cst_13, %29 : f32
    %cst_14 = arith.constant 5.110000e+02 : f32
    %31 = arith.divf %30, %cst_14 : f32
    %cst_15 = arith.constant 0.000000e+00 : f32
    %32 = arith.cmpf oeq, %31, %cst_15 : f32
    %cst_16 = arith.constant 9.99999974E-6 : f32
    %33 = arith.select %32, %cst_16, %31 : f32
    %34 = vector.broadcast %33 : f32 to vector<16x32xf32>
    %35 = arith.divf %24, %34 : vector<16x32xf32>
    %36 = math.roundeven %35 : vector<16x32xf32>
    %cst_17 = arith.constant -2.560000e+02 : f32
    %cst_18 = arith.constant 2.550000e+02 : f32
    %37 = vector.broadcast %cst_17 : f32 to vector<16x32xf32>
    %38 = arith.maximumf %37, %36 : vector<16x32xf32>
    %39 = vector.broadcast %cst_18 : f32 to vector<16x32xf32>
    %40 = arith.minimumf %39, %38 : vector<16x32xf32>
    %41 = vector.broadcast %33 : f32 to vector<16x32xf32>
    %42 = arith.mulf %40, %41 : vector<16x32xf32>
    %c0_19 = arith.constant 0 : index
    %c0_20 = arith.constant 0 : index
    %43 = vector.load %arg2[%c0_19, %c0_20] : memref<32x96xf32, #tpu.memory_space<vmem>>, vector<32x96xf32>
    %cst_21 = arith.constant dense<0.000000e+00> : vector<16x96xf32>
    %44 = tpu.matmul %42, %43, %cst_21 {dimension_numbers = #tpu.dot_dimension_numbers<[1], [0], [0], [1], [0, 0, 1, 1], [], []>} : vector<16x32xf32>, vector<32x96xf32>, vector<16x96xf32> -> vector<16x96xf32>
    %c0_22 = arith.constant 0 : index
    %c0_23 = arith.constant 0 : index
    %45 = vector.load %arg3[%c0_22, %c0_23] : memref<1x96xf32, #tpu.memory_space<vmem>>, vector<1x96xf32>
    %46 = vector.broadcast %45 : vector<1x96xf32> to vector<16x96xf32>
    %47 = arith.addf %44, %46 : vector<16x96xf32>
    %c0_24 = arith.constant 0 : index
    %c0_25 = arith.constant 0 : index
    %48 = vector.load %arg4[%c0_24, %c0_25] : memref<32x32xf32, #tpu.memory_space<vmem>>, vector<32x32xf32>
    %49 = vector.extract_strided_slice %47 {offsets = [0, 0], sizes = [16, 8], strides = [1, 1]} : vector<16x96xf32> to vector<16x8xf32>
    %50 = vector.shape_cast %49 : vector<16x8xf32> to vector<2x8x8xf32>
    %51 = vector.extract_strided_slice %47 {offsets = [0, 32], sizes = [16, 8], strides = [1, 1]} : vector<16x96xf32> to vector<16x8xf32>
    %52 = vector.shape_cast %51 : vector<16x8xf32> to vector<2x8x8xf32>
    %53 = vector.extract_strided_slice %47 {offsets = [0, 64], sizes = [16, 8], strides = [1, 1]} : vector<16x96xf32> to vector<16x8xf32>
    %54 = vector.shape_cast %53 : vector<16x8xf32> to vector<2x8x8xf32>
    "tpu.trace_start"() <{level = 10 : i32, message = "bqd,bkd->bqk"}> : () -> ()
    %cst_26 = arith.constant dense<0.000000e+00> : vector<2x8x8xf32>
    %55 = tpu.matmul %50, %52, %cst_26 {dimension_numbers = #tpu.dot_dimension_numbers<[2], [2], [1], [1], [0, 0, 0, 1, 1, 1], [0], [0]>} : vector<2x8x8xf32>, vector<2x8x8xf32>, vector<2x8x8xf32> -> vector<2x8x8xf32>
    "tpu.trace_stop"() : () -> ()
    %cst_27 = arith.constant 0.353553385 : f32
    %56 = vector.broadcast %cst_27 : f32 to vector<2x8x8xf32>
    %57 = arith.mulf %55, %56 : vector<2x8x8xf32>
    %58 = arith.addf %57, %1 : vector<2x8x8xf32>
    %cst_28 = arith.constant dense<0xFF800000> : vector<2x8xf32>
    %59 = vector.multi_reduction <maximumf>, %58, %cst_28 [2] : vector<2x8x8xf32> to vector<2x8xf32>
    %60 = vector.shape_cast %59 : vector<2x8xf32> to vector<2x8x1xf32>
    %61 = vector.broadcast %60 : vector<2x8x1xf32> to vector<2x8x8xf32>
    %62 = arith.subf %58, %61 : vector<2x8x8xf32>
    %63 = math.exp %62 : vector<2x8x8xf32>
    %cst_29 = arith.constant dense<0.000000e+00> : vector<2x8xf32>
    %64 = vector.multi_reduction <add>, %63, %cst_29 [2] : vector<2x8x8xf32> to vector<2x8xf32>
    %65 = vector.shape_cast %64 : vector<2x8xf32> to vector<2x8x1xf32>
    %66 = tpu.reciprocal %65 {approx = true} : vector<2x8x1xf32> -> vector<2x8x1xf32>
    %67 = vector.broadcast %66 : vector<2x8x1xf32> to vector<2x8x8xf32>
    %68 = arith.mulf %63, %67 : vector<2x8x8xf32>
    "tpu.trace_start"() <{level = 10 : i32, message = "bqk,bkd->bqd"}> : () -> ()
    %cst_30 = arith.constant dense<0.000000e+00> : vector<2x8x8xf32>
    %69 = tpu.matmul %68, %54, %cst_30 {dimension_numbers = #tpu.dot_dimension_numbers<[2], [1], [1], [2], [0, 0, 0, 1, 1, 2], [0], [0]>} : vector<2x8x8xf32>, vector<2x8x8xf32>, vector<2x8x8xf32> -> vector<2x8x8xf32>
    "tpu.trace_stop"() : () -> ()
    %70 = math.absf %69 : vector<2x8x8xf32>
    %71 = vector.shape_cast %70 : vector<2x8x8xf32> to vector<1x2x8x8xf32>
    %cst_31 = arith.constant dense<0xFF800000> : vector<1xf32>
    %72 = vector.multi_reduction <maximumf>, %71, %cst_31 [1, 2, 3] : vector<1x2x8x8xf32> to vector<1xf32>
    %73 = vector.shape_cast %72 : vector<1xf32> to vector<1x1x1x1xf32>
    %74 = vector.extract %73[0, 0, 0, 0] : f32 from vector<1x1x1x1xf32>
    %cst_32 = arith.constant 0.000000e+00 : f32
    %75 = arith.maximumf %cst_32, %74 : f32
    %76 = vector.extract_strided_slice %47 {offsets = [0, 8], sizes = [16, 8], strides = [1, 1]} : vector<16x96xf32> to vector<16x8xf32>
    %77 = vector.shape_cast %76 : vector<16x8xf32> to vector<2x8x8xf32>
    %78 = vector.extract_strided_slice %47 {offsets = [0, 40], sizes = [16, 8], strides = [1, 1]} : vector<16x96xf32> to vector<16x8xf32>
    %79 = vector.shape_cast %78 : vector<16x8xf32> to vector<2x8x8xf32>
    %80 = vector.extract_strided_slice %47 {offsets = [0, 72], sizes = [16, 8], strides = [1, 1]} : vector<16x96xf32> to vector<16x8xf32>
    %81 = vector.shape_cast %80 : vector<16x8xf32> to vector<2x8x8xf32>
    "tpu.trace_start"() <{level = 10 : i32, message = "bqd,bkd->bqk"}> : () -> ()
    %cst_33 = arith.constant dense<0.000000e+00> : vector<2x8x8xf32>
    %82 = tpu.matmul %77, %79, %cst_33 {dimension_numbers = #tpu.dot_dimension_numbers<[2], [2], [1], [1], [0, 0, 0, 1, 1, 1], [0], [0]>} : vector<2x8x8xf32>, vector<2x8x8xf32>, vector<2x8x8xf32> -> vector<2x8x8xf32>
    "tpu.trace_stop"() : () -> ()
    %cst_34 = arith.constant 0.353553385 : f32
    %83 = vector.broadcast %cst_34 : f32 to vector<2x8x8xf32>
    %84 = arith.mulf %82, %83 : vector<2x8x8xf32>
    %85 = arith.addf %84, %1 : vector<2x8x8xf32>
    %cst_35 = arith.constant dense<0xFF800000> : vector<2x8xf32>
    %86 = vector.multi_reduction <maximumf>, %85, %cst_35 [2] : vector<2x8x8xf32> to vector<2x8xf32>
    %87 = vector.shape_cast %86 : vector<2x8xf32> to vector<2x8x1xf32>
    %88 = vector.broadcast %87 : vector<2x8x1xf32> to vector<2x8x8xf32>
    %89 = arith.subf %85, %88 : vector<2x8x8xf32>
    %90 = math.exp %89 : vector<2x8x8xf32>
    %cst_36 = arith.constant dense<0.000000e+00> : vector<2x8xf32>
    %91 = vector.multi_reduction <add>, %90, %cst_36 [2] : vector<2x8x8xf32> to vector<2x8xf32>
    %92 = vector.shape_cast %91 : vector<2x8xf32> to vector<2x8x1xf32>
    %93 = tpu.reciprocal %92 {approx = true} : vector<2x8x1xf32> -> vector<2x8x1xf32>
    %94 = vector.broadcast %93 : vector<2x8x1xf32> to vector<2x8x8xf32>
    %95 = arith.mulf %90, %94 : vector<2x8x8xf32>
    "tpu.trace_start"() <{level = 10 : i32, message = "bqk,bkd->bqd"}> : () -> ()
    %cst_37 = arith.constant dense<0.000000e+00> : vector<2x8x8xf32>
    %96 = tpu.matmul %95, %81, %cst_37 {dimension_numbers = #tpu.dot_dimension_numbers<[2], [1], [1], [2], [0, 0, 0, 1, 1, 2], [0], [0]>} : vector<2x8x8xf32>, vector<2x8x8xf32>, vector<2x8x8xf32> -> vector<2x8x8xf32>
    "tpu.trace_stop"() : () -> ()
    %97 = math.absf %96 : vector<2x8x8xf32>
    %98 = vector.shape_cast %97 : vector<2x8x8xf32> to vector<1x2x8x8xf32>
    %cst_38 = arith.constant dense<0xFF800000> : vector<1xf32>
    %99 = vector.multi_reduction <maximumf>, %98, %cst_38 [1, 2, 3] : vector<1x2x8x8xf32> to vector<1xf32>
    %100 = vector.shape_cast %99 : vector<1xf32> to vector<1x1x1x1xf32>
    %101 = vector.extract %100[0, 0, 0, 0] : f32 from vector<1x1x1x1xf32>
    %102 = arith.maximumf %75, %101 : f32
    %103 = vector.extract_strided_slice %47 {offsets = [0, 16], sizes = [16, 8], strides = [1, 1]} : vector<16x96xf32> to vector<16x8xf32>
    %104 = vector.shape_cast %103 : vector<16x8xf32> to vector<2x8x8xf32>
    %105 = vector.extract_strided_slice %47 {offsets = [0, 48], sizes = [16, 8], strides = [1, 1]} : vector<16x96xf32> to vector<16x8xf32>
    %106 = vector.shape_cast %105 : vector<16x8xf32> to vector<2x8x8xf32>
    %107 = vector.extract_strided_slice %47 {offsets = [0, 80], sizes = [16, 8], strides = [1, 1]} : vector<16x96xf32> to vector<16x8xf32>
    %108 = vector.shape_cast %107 : vector<16x8xf32> to vector<2x8x8xf32>
    "tpu.trace_start"() <{level = 10 : i32, message = "bqd,bkd->bqk"}> : () -> ()
    %cst_39 = arith.constant dense<0.000000e+00> : vector<2x8x8xf32>
    %109 = tpu.matmul %104, %106, %cst_39 {dimension_numbers = #tpu.dot_dimension_numbers<[2], [2], [1], [1], [0, 0, 0, 1, 1, 1], [0], [0]>} : vector<2x8x8xf32>, vector<2x8x8xf32>, vector<2x8x8xf32> -> vector<2x8x8xf32>
    "tpu.trace_stop"() : () -> ()
    %cst_40 = arith.constant 0.353553385 : f32
    %110 = vector.broadcast %cst_40 : f32 to vector<2x8x8xf32>
    %111 = arith.mulf %109, %110 : vector<2x8x8xf32>
    %112 = arith.addf %111, %1 : vector<2x8x8xf32>
    %cst_41 = arith.constant dense<0xFF800000> : vector<2x8xf32>
    %113 = vector.multi_reduction <maximumf>, %112, %cst_41 [2] : vector<2x8x8xf32> to vector<2x8xf32>
    %114 = vector.shape_cast %113 : vector<2x8xf32> to vector<2x8x1xf32>
    %115 = vector.broadcast %114 : vector<2x8x1xf32> to vector<2x8x8xf32>
    %116 = arith.subf %112, %115 : vector<2x8x8xf32>
    %117 = math.exp %116 : vector<2x8x8xf32>
    %cst_42 = arith.constant dense<0.000000e+00> : vector<2x8xf32>
    %118 = vector.multi_reduction <add>, %117, %cst_42 [2] : vector<2x8x8xf32> to vector<2x8xf32>
    %119 = vector.shape_cast %118 : vector<2x8xf32> to vector<2x8x1xf32>
    %120 = tpu.reciprocal %119 {approx = true} : vector<2x8x1xf32> -> vector<2x8x1xf32>
    %121 = vector.broadcast %120 : vector<2x8x1xf32> to vector<2x8x8xf32>
    %122 = arith.mulf %117, %121 : vector<2x8x8xf32>
    "tpu.trace_start"() <{level = 10 : i32, message = "bqk,bkd->bqd"}> : () -> ()
    %cst_43 = arith.constant dense<0.000000e+00> : vector<2x8x8xf32>
    %123 = tpu.matmul %122, %108, %cst_43 {dimension_numbers = #tpu.dot_dimension_numbers<[2], [1], [1], [2], [0, 0, 0, 1, 1, 2], [0], [0]>} : vector<2x8x8xf32>, vector<2x8x8xf32>, vector<2x8x8xf32> -> vector<2x8x8xf32>
    "tpu.trace_stop"() : () -> ()
    %124 = math.absf %123 : vector<2x8x8xf32>
    %125 = vector.shape_cast %124 : vector<2x8x8xf32> to vector<1x2x8x8xf32>
    %cst_44 = arith.constant dense<0xFF800000> : vector<1xf32>
    %126 = vector.multi_reduction <maximumf>, %125, %cst_44 [1, 2, 3] : vector<1x2x8x8xf32> to vector<1xf32>
    %127 = vector.shape_cast %126 : vector<1xf32> to vector<1x1x1x1xf32>
    %128 = vector.extract %127[0, 0, 0, 0] : f32 from vector<1x1x1x1xf32>
    %129 = arith.maximumf %102, %128 : f32
    %130 = vector.extract_strided_slice %47 {offsets = [0, 24], sizes = [16, 8], strides = [1, 1]} : vector<16x96xf32> to vector<16x8xf32>
    %131 = vector.shape_cast %130 : vector<16x8xf32> to vector<2x8x8xf32>
    %132 = vector.extract_strided_slice %47 {offsets = [0, 56], sizes = [16, 8], strides = [1, 1]} : vector<16x96xf32> to vector<16x8xf32>
    %133 = vector.shape_cast %132 : vector<16x8xf32> to vector<2x8x8xf32>
    %134 = vector.extract_strided_slice %47 {offsets = [0, 88], sizes = [16, 8], strides = [1, 1]} : vector<16x96xf32> to vector<16x8xf32>
    %135 = vector.shape_cast %134 : vector<16x8xf32> to vector<2x8x8xf32>
    "tpu.trace_start"() <{level = 10 : i32, message = "bqd,bkd->bqk"}> : () -> ()
    %cst_45 = arith.constant dense<0.000000e+00> : vector<2x8x8xf32>
    %136 = tpu.matmul %131, %133, %cst_45 {dimension_numbers = #tpu.dot_dimension_numbers<[2], [2], [1], [1], [0, 0, 0, 1, 1, 1], [0], [0]>} : vector<2x8x8xf32>, vector<2x8x8xf32>, vector<2x8x8xf32> -> vector<2x8x8xf32>
    "tpu.trace_stop"() : () -> ()
    %cst_46 = arith.constant 0.353553385 : f32
    %137 = vector.broadcast %cst_46 : f32 to vector<2x8x8xf32>
    %138 = arith.mulf %136, %137 : vector<2x8x8xf32>
    %139 = arith.addf %138, %1 : vector<2x8x8xf32>
    %cst_47 = arith.constant dense<0xFF800000> : vector<2x8xf32>
    %140 = vector.multi_reduction <maximumf>, %139, %cst_47 [2] : vector<2x8x8xf32> to vector<2x8xf32>
    %141 = vector.shape_cast %140 : vector<2x8xf32> to vector<2x8x1xf32>
    %142 = vector.broadcast %141 : vector<2x8x1xf32> to vector<2x8x8xf32>
    %143 = arith.subf %139, %142 : vector<2x8x8xf32>
    %144 = math.exp %143 : vector<2x8x8xf32>
    %cst_48 = arith.constant dense<0.000000e+00> : vector<2x8xf32>
    %145 = vector.multi_reduction <add>, %144, %cst_48 [2] : vector<2x8x8xf32> to vector<2x8xf32>
    %146 = vector.shape_cast %145 : vector<2x8xf32> to vector<2x8x1xf32>
    %147 = tpu.reciprocal %146 {approx = true} : vector<2x8x1xf32> -> vector<2x8x1xf32>
    %148 = vector.broadcast %147 : vector<2x8x1xf32> to vector<2x8x8xf32>
    %149 = arith.mulf %144, %148 : vector<2x8x8xf32>
    "tpu.trace_start"() <{level = 10 : i32, message = "bqk,bkd->bqd"}> : () -> ()
    %cst_49 = arith.constant dense<0.000000e+00> : vector<2x8x8xf32>
    %150 = tpu.matmul %149, %135, %cst_49 {dimension_numbers = #tpu.dot_dimension_numbers<[2], [1], [1], [2], [0, 0, 0, 1, 1, 2], [0], [0]>} : vector<2x8x8xf32>, vector<2x8x8xf32>, vector<2x8x8xf32> -> vector<2x8x8xf32>
    "tpu.trace_stop"() : () -> ()
    %151 = math.absf %150 : vector<2x8x8xf32>
    %152 = vector.shape_cast %151 : vector<2x8x8xf32> to vector<1x2x8x8xf32>
    %cst_50 = arith.constant dense<0xFF800000> : vector<1xf32>
    %153 = vector.multi_reduction <maximumf>, %152, %cst_50 [1, 2, 3] : vector<1x2x8x8xf32> to vector<1xf32>
    %154 = vector.shape_cast %153 : vector<1xf32> to vector<1x1x1x1xf32>
    %155 = vector.extract %154[0, 0, 0, 0] : f32 from vector<1x1x1x1xf32>
    %156 = arith.maximumf %129, %155 : f32
    %cst_51 = arith.constant 2.000000e+00 : f32
    %157 = arith.mulf %cst_51, %156 : f32
    %cst_52 = arith.constant 5.110000e+02 : f32
    %158 = arith.divf %157, %cst_52 : f32
    %cst_53 = arith.constant 0.000000e+00 : f32
    %159 = arith.cmpf oeq, %158, %cst_53 : f32
    %cst_54 = arith.constant 9.99999974E-6 : f32
    %160 = arith.select %159, %cst_54, %158 : f32
    %161 = vector.broadcast %160 : f32 to vector<2x8x8xf32>
    %162 = arith.divf %69, %161 : vector<2x8x8xf32>
    %163 = math.roundeven %162 : vector<2x8x8xf32>
    %cst_55 = arith.constant -2.560000e+02 : f32
    %cst_56 = arith.constant 2.550000e+02 : f32
    %164 = vector.broadcast %cst_55 : f32 to vector<2x8x8xf32>
    %165 = arith.maximumf %164, %163 : vector<2x8x8xf32>
    %166 = vector.broadcast %cst_56 : f32 to vector<2x8x8xf32>
    %167 = arith.minimumf %166, %165 : vector<2x8x8xf32>
    %168 = vector.broadcast %160 : f32 to vector<2x8x8xf32>
    %169 = arith.mulf %167, %168 : vector<2x8x8xf32>
    %170 = vector.shape_cast %169 : vector<2x8x8xf32> to vector<16x8xf32>
    %171 = vector.extract_strided_slice %48 {offsets = [0, 0], sizes = [8, 32], strides = [1, 1]} : vector<32x32xf32> to vector<8x32xf32>
    %cst_57 = arith.constant dense<0.000000e+00> : vector<16x32xf32>
    %172 = tpu.matmul %170, %171, %cst_57 {dimension_numbers = #tpu.dot_dimension_numbers<[1], [0], [0], [1], [0, 0, 1, 1], [], []>} : vector<16x8xf32>, vector<8x32xf32>, vector<16x32xf32> -> vector<16x32xf32>
    %173 = vector.broadcast %160 : f32 to vector<2x8x8xf32>
    %174 = arith.divf %96, %173 : vector<2x8x8xf32>
    %175 = math.roundeven %174 : vector<2x8x8xf32>
    %cst_58 = arith.constant -2.560000e+02 : f32
    %cst_59 = arith.constant 2.550000e+02 : f32
    %176 = vector.broadcast %cst_58 : f32 to vector<2x8x8xf32>
    %177 = arith.maximumf %176, %175 : vector<2x8x8xf32>
    %178 = vector.broadcast %cst_59 : f32 to vector<2x8x8xf32>
    %179 = arith.minimumf %178, %177 : vector<2x8x8xf32>
    %180 = vector.broadcast %160 : f32 to vector<2x8x8xf32>
    %181 = arith.mulf %179, %180 : vector<2x8x8xf32>
    %182 = vector.shape_cast %181 : vector<2x8x8xf32> to vector<16x8xf32>
    %183 = vector.extract_strided_slice %48 {offsets = [8, 0], sizes = [8, 32], strides = [1, 1]} : vector<32x32xf32> to vector<8x32xf32>
    %cst_60 = arith.constant dense<0.000000e+00> : vector<16x32xf32>
    %184 = tpu.matmul %182, %183, %cst_60 {dimension_numbers = #tpu.dot_dimension_numbers<[1], [0], [0], [1], [0, 0, 1, 1], [], []>} : vector<16x8xf32>, vector<8x32xf32>, vector<16x32xf32> -> vector<16x32xf32>
    %185 = arith.addf %172, %184 : vector<16x32xf32>
    %186 = vector.broadcast %160 : f32 to vector<2x8x8xf32>
    %187 = arith.divf %123, %186 : vector<2x8x8xf32>
    %188 = math.roundeven %187 : vector<2x8x8xf32>
    %cst_61 = arith.constant -2.560000e+02 : f32
    %cst_62 = arith.constant 2.550000e+02 : f32
    %189 = vector.broadcast %cst_61 : f32 to vector<2x8x8xf32>
    %190 = arith.maximumf %189, %188 : vector<2x8x8xf32>
    %191 = vector.broadcast %cst_62 : f32 to vector<2x8x8xf32>
    %192 = arith.minimumf %191, %190 : vector<2x8x8xf32>
    %193 = vector.broadcast %160 : f32 to vector<2x8x8xf32>
    %194 = arith.mulf %192, %193 : vector<2x8x8xf32>
    %195 = vector.shape_cast %194 : vector<2x8x8xf32> to vector<16x8xf32>
    %196 = vector.extract_strided_slice %48 {offsets = [16, 0], sizes = [8, 32], strides = [1, 1]} : vector<32x32xf32> to vector<8x32xf32>
    %cst_63 = arith.constant dense<0.000000e+00> : vector<16x32xf32>
    %197 = tpu.matmul %195, %196, %cst_63 {dimension_numbers = #tpu.dot_dimension_numbers<[1], [0], [0], [1], [0, 0, 1, 1], [], []>} : vector<16x8xf32>, vector<8x32xf32>, vector<16x32xf32> -> vector<16x32xf32>
    %198 = arith.addf %185, %197 : vector<16x32xf32>
    %199 = vector.broadcast %160 : f32 to vector<2x8x8xf32>
    %200 = arith.divf %150, %199 : vector<2x8x8xf32>
    %201 = math.roundeven %200 : vector<2x8x8xf32>
    %cst_64 = arith.constant -2.560000e+02 : f32
    %cst_65 = arith.constant 2.550000e+02 : f32
    %202 = vector.broadcast %cst_64 : f32 to vector<2x8x8xf32>
    %203 = arith.maximumf %202, %201 : vector<2x8x8xf32>
    %204 = vector.broadcast %cst_65 : f32 to vector<2x8x8xf32>
    %205 = arith.minimumf %204, %203 : vector<2x8x8xf32>
    %206 = vector.broadcast %160 : f32 to vector<2x8x8xf32>
    %207 = arith.mulf %205, %206 : vector<2x8x8xf32>
    %208 = vector.shape_cast %207 : vector<2x8x8xf32> to vector<16x8xf32>
    %209 = vector.extract_strided_slice %48 {offsets = [24, 0], sizes = [8, 32], strides = [1, 1]} : vector<32x32xf32> to vector<8x32xf32>
    %cst_66 = arith.constant dense<0.000000e+00> : vector<16x32xf32>
    %210 = tpu.matmul %208, %209, %cst_66 {dimension_numbers = #tpu.dot_dimension_numbers<[1], [0], [0], [1], [0, 0, 1, 1], [], []>} : vector<16x8xf32>, vector<8x32xf32>, vector<16x32xf32> -> vector<16x32xf32>
    %211 = arith.addf %198, %210 : vector<16x32xf32>
    %c0_67 = arith.constant 0 : index
    %c0_68 = arith.constant 0 : index
    %212 = vector.load %arg5[%c0_67, %c0_68] : memref<1x32xf32, #tpu.memory_space<vmem>>, vector<1x32xf32>
    %213 = vector.broadcast %212 : vector<1x32xf32> to vector<16x32xf32>
    %214 = arith.addf %211, %213 : vector<16x32xf32>
    %215 = arith.addf %0, %214 : vector<16x32xf32>
    %c0_69 = arith.constant 0 : index
    %c0_70 = arith.constant 0 : index
    %216 = vector.load %arg8[%c0_69, %c0_70] : memref<1x32xf32, #tpu.memory_space<vmem>>, vector<1x32xf32>
    %c0_71 = arith.constant 0 : index
    %c0_72 = arith.constant 0 : index
    %217 = vector.load %arg9[%c0_71, %c0_72] : memref<1x32xf32, #tpu.memory_space<vmem>>, vector<1x32xf32>
    %cst_73 = arith.constant dense<0.000000e+00> : vector<16xf32>
    %218 = vector.multi_reduction <add>, %215, %cst_73 [1] : vector<16x32xf32> to vector<16xf32>
    %219 = vector.shape_cast %218 : vector<16xf32> to vector<16x1xf32>
    %cst_74 = arith.constant 3.125000e-02 : f32
    %220 = vector.broadcast %cst_74 : f32 to vector<16x1xf32>
    %221 = arith.mulf %219, %220 : vector<16x1xf32>
    %222 = vector.broadcast %221 : vector<16x1xf32> to vector<16x32xf32>
    %223 = arith.subf %215, %222 : vector<16x32xf32>
    %224 = arith.mulf %223, %223 : vector<16x32xf32>
    %cst_75 = arith.constant dense<0.000000e+00> : vector<16xf32>
    %225 = vector.multi_reduction <add>, %224, %cst_75 [1] : vector<16x32xf32> to vector<16xf32>
    %226 = vector.shape_cast %225 : vector<16xf32> to vector<16x1xf32>
    %cst_76 = arith.constant 0.0322580636 : f32
    %227 = vector.broadcast %cst_76 : f32 to vector<16x1xf32>
    %228 = arith.mulf %226, %227 : vector<16x1xf32>
    %229 = math.sqrt %228 : vector<16x1xf32>
    %cst_77 = arith.constant 9.99999997E-7 : f32
    %230 = vector.broadcast %cst_77 : f32 to vector<16x1xf32>
    %231 = arith.addf %229, %230 : vector<16x1xf32>
    %232 = tpu.reciprocal %231 {approx = true} : vector<16x1xf32> -> vector<16x1xf32>
    %233 = vector.broadcast %216 : vector<1x32xf32> to vector<16x32xf32>
    %234 = arith.mulf %233, %223 : vector<16x32xf32>
    %235 = vector.broadcast %232 : vector<16x1xf32> to vector<16x32xf32>
    %236 = arith.mulf %234, %235 : vector<16x32xf32>
    %237 = vector.broadcast %217 : vector<1x32xf32> to vector<16x32xf32>
    %238 = arith.addf %236, %237 : vector<16x32xf32>
    %239 = math.absf %238 : vector<16x32xf32>
    %240 = vector.shape_cast %239 : vector<16x32xf32> to vector<1x16x32xf32>
    %cst_78 = arith.constant dense<0xFF800000> : vector<1xf32>
    %241 = vector.multi_reduction <maximumf>, %240, %cst_78 [1, 2] : vector<1x16x32xf32> to vector<1xf32>
    %242 = vector.shape_cast %241 : vector<1xf32> to vector<1x1x1xf32>
    %243 = vector.extract %242[0, 0, 0] : f32 from vector<1x1x1xf32>
    %cst_79 = arith.constant 2.000000e+00 : f32
    %244 = arith.mulf %cst_79, %243 : f32
    %cst_80 = arith.constant 5.110000e+02 : f32
    %245 = arith.divf %244, %cst_80 : f32
    %cst_81 = arith.constant 0.000000e+00 : f32
    %246 = arith.cmpf oeq, %245, %cst_81 : f32
    %cst_82 = arith.constant 9.99999974E-6 : f32
    %247 = arith.select %246, %cst_82, %245 : f32
    %248 = vector.broadcast %247 : f32 to vector<16x32xf32>
    %249 = arith.divf %238, %248 : vector<16x32xf32>
    %250 = math.roundeven %249 : vector<16x32xf32>
    %cst_83 = arith.constant -2.560000e+02 : f32
    %cst_84 = arith.constant 2.550000e+02 : f32
    %251 = vector.broadcast %cst_83 : f32 to vector<16x32xf32>
    %252 = arith.maximumf %251, %250 : vector<16x32xf32>
    %253 = vector.broadcast %cst_84 : f32 to vector<16x32xf32>
    %254 = arith.minimumf %253, %252 : vector<16x32xf32>
    %255 = vector.broadcast %247 : f32 to vector<16x32xf32>
    %256 = arith.mulf %254, %255 : vector<16x32xf32>
    %c0_85 = arith.constant 0 : index
    %c0_86 = arith.constant 0 : index
    %257 = vector.load %arg10[%c0_85, %c0_86] : memref<32x64xf32, #tpu.memory_space<vmem>>, vector<32x64xf32>
    %cst_87 = arith.constant dense<0.000000e+00> : vector<16x64xf32>
    %258 = tpu.matmul %256, %257, %cst_87 {dimension_numbers = #tpu.dot_dimension_numbers<[1], [0], [0], [1], [0, 0, 1, 1], [], []>} : vector<16x32xf32>, vector<32x64xf32>, vector<16x64xf32> -> vector<16x64xf32>
    %c0_88 = arith.constant 0 : index
    %c0_89 = arith.constant 0 : index
    %259 = vector.load %arg11[%c0_88, %c0_89] : memref<1x64xf32, #tpu.memory_space<vmem>>, vector<1x64xf32>
    %260 = vector.broadcast %259 : vector<1x64xf32> to vector<16x64xf32>
    %261 = arith.addf %258, %260 : vector<16x64xf32>
    %cst_90 = arith.constant 5.000000e-01 : f32
    %262 = vector.broadcast %cst_90 : f32 to vector<16x64xf32>
    %263 = arith.mulf %262, %261 : vector<16x64xf32>
    %264 = arith.mulf %261, %261 : vector<16x64xf32>
    %265 = arith.mulf %261, %264 : vector<16x64xf32>
    %cst_91 = arith.constant 4.471500e-02 : f32
    %266 = vector.broadcast %cst_91 : f32 to vector<16x64xf32>
    %267 = arith.mulf %266, %265 : vector<16x64xf32>
    %268 = arith.addf %261, %267 : vector<16x64xf32>
    %cst_92 = arith.constant 0.797884583 : f32
    %269 = vector.broadcast %cst_92 : f32 to vector<16x64xf32>
    %270 = arith.mulf %269, %268 : vector<16x64xf32>
    %271 = math.tanh %270 : vector<16x64xf32>
    %cst_93 = arith.constant 1.000000e+00 : f32
    %272 = vector.broadcast %cst_93 : f32 to vector<16x64xf32>
    %273 = arith.addf %272, %271 : vector<16x64xf32>
    %274 = arith.mulf %263, %273 : vector<16x64xf32>
    %c0_94 = arith.constant 0 : index
    %c0_95 = arith.constant 0 : index
    %275 = vector.load %arg12[%c0_94, %c0_95] : memref<64x32xf32, #tpu.memory_space<vmem>>, vector<64x32xf32>
    %cst_96 = arith.constant dense<0.000000e+00> : vector<16x32xf32>
    %276 = tpu.matmul %274, %275, %cst_96 {dimension_numbers = #tpu.dot_dimension_numbers<[1], [0], [0], [1], [0, 0, 1, 1], [], []>} : vector<16x64xf32>, vector<64x32xf32>, vector<16x32xf32> -> vector<16x32xf32>
    %c0_97 = arith.constant 0 : index
    %c0_98 = arith.constant 0 : index
    %277 = vector.load %arg13[%c0_97, %c0_98] : memref<1x32xf32, #tpu.memory_space<vmem>>, vector<1x32xf32>
    %278 = vector.broadcast %277 : vector<1x32xf32> to vector<16x32xf32>
    %279 = arith.addf %276, %278 : vector<16x32xf32>
    %280 = math.absf %279 : vector<16x32xf32>
    %281 = vector.shape_cast %280 : vector<16x32xf32> to vector<1x16x32xf32>
    %cst_99 = arith.constant dense<0xFF800000> : vector<1xf32>
    %282 = vector.multi_reduction <maximumf>, %281, %cst_99 [1, 2] : vector<1x16x32xf32> to vector<1xf32>
    %283 = vector.shape_cast %282 : vector<1xf32> to vector<1x1x1xf32>
    %284 = vector.extract %283[0, 0, 0] : f32 from vector<1x1x1xf32>
    %cst_100 = arith.constant 2.000000e+00 : f32
    %285 = arith.mulf %cst_100, %284 : f32
    %cst_101 = arith.constant 5.110000e+02 : f32
    %286 = arith.divf %285, %cst_101 : f32
    %cst_102 = arith.constant 0.000000e+00 : f32
    %287 = arith.cmpf oeq, %286, %cst_102 : f32
    %cst_103 = arith.constant 9.99999974E-6 : f32
    %288 = arith.select %287, %cst_103, %286 : f32
    %289 = vector.broadcast %288 : f32 to vector<16x32xf32>
    %290 = arith.divf %279, %289 : vector<16x32xf32>
    %291 = math.roundeven %290 : vector<16x32xf32>
    %cst_104 = arith.constant -2.560000e+02 : f32
    %cst_105 = arith.constant 2.550000e+02 : f32
    %292 = vector.broadcast %cst_104 : f32 to vector<16x32xf32>
    %293 = arith.maximumf %292, %291 : vector<16x32xf32>
    %294 = vector.broadcast %cst_105 : f32 to vector<16x32xf32>
    %295 = arith.minimumf %294, %293 : vector<16x32xf32>
    %296 = vector.broadcast %288 : f32 to vector<16x32xf32>
    %297 = arith.mulf %295, %296 : vector<16x32xf32>
    %298 = arith.addf %215, %297 : vector<16x32xf32>
    %c0_106 = arith.constant 0 : index
    %c0_107 = arith.constant 0 : index
    %299 = vector.load %arg14[%c0_106, %c0_107] : memref<16x32xf32, #tpu.memory_space<vmem>>, vector<16x32xf32>
    tpu.vector_store %arg14[%c0_106, %c0_107], %298 {strides = array<i32>} : memref<16x32xf32, #tpu.memory_space<vmem>>, vector<16x32xf32>,
    return
  }
}

</mosaic_0001>

<llo_original>
// kernel: tpu_custom_call.1
$region0: #{tpu_custom_call.1}
  #allocation0 [shape = 'u32[]', space=smem, size = 0x4, offset = 0x4, fixed_abs, tag = 'smem constant byte address 0x4 - core index']
  #allocation1 [shape = 'u32[144,128]{1,0:T(1,128)}', space=vmem, size = 0x12000, scoped, tag = 'internal scratch']
  %s0 = inlined_call_operand.hbm [shape: f32[16,32], index: 0, kind: input, shape index: {}]
  %s1 = inlined_call_operand.hbm [shape: f32[2,8,8], index: 1, kind: input, shape index: {}]
  %s2 = inlined_call_operand.vmem [shape: f32[32,96], index: 2, kind: input, shape index: {}]
  %s3 = inlined_call_operand.vmem [shape: f32[1,96], index: 3, kind: input, shape index: {}]
  %s4 = inlined_call_operand.vmem [shape: f32[32,32], index: 4, kind: input, shape index: {}]
  %s5 = inlined_call_operand.vmem [shape: f32[1,32], index: 5, kind: input, shape index: {}]
  %s6 = inlined_call_operand.vmem [shape: f32[1,32], index: 6, kind: input, shape index: {}]
  %s7 = inlined_call_operand.vmem [shape: f32[1,32], index: 7, kind: input, shape index: {}]
  %s8 = inlined_call_operand.vmem [shape: f32[1,32], index: 8, kind: input, shape index: {}]
  %s9 = inlined_call_operand.vmem [shape: f32[1,32], index: 9, kind: input, shape index: {}]
  %s10 = inlined_call_operand.vmem [shape: f32[32,64], index: 10, kind: input, shape index: {}]
  %s11 = inlined_call_operand.vmem [shape: f32[1,64], index: 11, kind: input, shape index: {}]
  %s12 = inlined_call_operand.vmem [shape: f32[64,32], index: 12, kind: input, shape index: {}]
  %s13 = inlined_call_operand.vmem [shape: f32[1,32], index: 13, kind: input, shape index: {}]
  %s14 = inlined_call_operand.hbm [shape: f32[16,32], index: 14, kind: output, shape index: {}]
  %s15 = sld [smem:[#allocation0]]
  $region74: #{tpu_custom_call.1} parent=0
    _
  %s17 = ssub.s32 1, %s15
  %s18 = scalar_select 0, %s17, %s15
  $region1: #{tpu_custom_call.1} parent=0
    #allocation2 [shape = 'u8[8192]{0}', space=vmem, size = 0x2000, scoped, tag = 'input window, operand 0, single buffered']
    #allocation3 [shape = 's32[1]{0}', space=sflag, size = 0x4, scoped, tag = 'scoped memory for tpu_custom_call.1']
    #allocation4 [shape = 's32[1]{0}', space=sflag, size = 0x4, scoped, tag = 'scoped memory for tpu_custom_call.1']
    #allocation5 [shape = 'u8[8192]{0}', space=vmem, size = 0x2000, scoped, tag = 'input window, operand 1, single buffered']
    #allocation6 [shape = 's32[1]{0}', space=sflag, size = 0x4, scoped, tag = 'scoped memory for tpu_custom_call.1']
    #allocation7 [shape = 'u8[8192]{0}', space=vmem, size = 0x2000, scoped, tag = 'output window, operand 0, single buffered']
    %19 = vsyncpa [#allocation3], 0
    %20 = vsyncpa [#allocation6], 0
    %21 = vsyncpa [#allocation4], 0
    // Predicated region
    $region2: #{tpu_custom_call.1} parent=1 // pred_check
      _
    $region3: #{tpu_custom_call.1} parent=1 // pred_check_branch
      %23 = sbr.rel (0) target = $region5
    $region4: #{tpu_custom_call.1} parent=1 // pred_region
      %s25 = ssub.s32 256, 256
      %26 = vsyncadd [#allocation3], %s25
      %s27 = sshll.u32 [#allocation2], 4
      %s28 = int_to_ptr.vmem [resolvable:$true] %s27
      %33 = dma.hbm_to_vmem [thread:$0]  %s0, 256, %s28, [#allocation3], 128, 128, 8
    $region5: #{tpu_custom_call.1} parent=1 // pred_fallthru
      _
    // Predicated region
    $region6: #{tpu_custom_call.1} parent=1 // pred_check
      _
    $region7: #{tpu_custom_call.1} parent=1 // pred_check_branch
      %35 = sbr.rel (0) target = $region9
    $region8: #{tpu_custom_call.1} parent=1 // pred_region
      %s37 = ssub.s32 256, 256
      %38 = vsyncadd [#allocation6], %s37
      %s39 = sshll.u32 [#allocation5], 4
      %s40 = int_to_ptr.vmem [resolvable:$true] %s39
      %45 = dma.hbm_to_vmem [thread:$0]  %s1, 256, %s40, [#allocation6], 128, 128, 8
    $region9: #{tpu_custom_call.1} parent=1 // pred_fallthru
      _
    // Predicated region
    $region10: #{tpu_custom_call.1} parent=1 // pred_check
      _
    $region11: #{tpu_custom_call.1} parent=1 // pred_check_branch
      %47 = sbr.rel (0) target = $region13
    $region12: #{tpu_custom_call.1} parent=1 // pred_region
      _
    $region13: #{tpu_custom_call.1} parent=1 // pred_fallthru
      _
    // Predicated region
    $region14: #{tpu_custom_call.1} parent=1 // pred_check
      _
    $region15: #{tpu_custom_call.1} parent=1 // pred_check_branch
      %49 = sbr.rel (0) target = $region17
    $region16: #{tpu_custom_call.1} parent=1 // pred_region
      _
    $region17: #{tpu_custom_call.1} parent=1 // pred_fallthru
      _
    // Predicated region
    $region18: #{tpu_custom_call.1} parent=1 // pred_check
      _
    $region19: #{tpu_custom_call.1} parent=1 // pred_check_branch
      %51 = sbr.rel (0) target = $region21
    $region20: #{tpu_custom_call.1} parent=1 // pred_region
      _
    $region21: #{tpu_custom_call.1} parent=1 // pred_fallthru
      _
    // Predicated region
    $region22: #{tpu_custom_call.1} parent=1 // pred_check
      _
    $region23: #{tpu_custom_call.1} parent=1 // pred_check_branch
      %53 = sbr.rel (0) target = $region25
    $region24: #{tpu_custom_call.1} parent=1 // pred_region
      _
    $region25: #{tpu_custom_call.1} parent=1 // pred_fallthru
      _
    // Predicated region
    $region26: #{tpu_custom_call.1} parent=1 // pred_check
      _
    $region27: #{tpu_custom_call.1} parent=1 // pred_check_branch
      %55 = sbr.rel (0) target = $region29
    $region28: #{tpu_custom_call.1} parent=1 // pred_region
      _
    $region29: #{tpu_custom_call.1} parent=1 // pred_fallthru
      _
    // Predicated region
    $region30: #{tpu_custom_call.1} parent=1 // pred_check
      _
    $region31: #{tpu_custom_call.1} parent=1 // pred_check_branch
      %57 = sbr.rel (0) target = $region33
    $region32: #{tpu_custom_call.1} parent=1 // pred_region
      _
    $region33: #{tpu_custom_call.1} parent=1 // pred_fallthru
      _
    // Predicated region
    $region34: #{tpu_custom_call.1} parent=1 // pred_check
      _
    $region35: #{tpu_custom_call.1} parent=1 // pred_check_branch
      %59 = sbr.rel (0) target = $region37
    $region36: #{tpu_custom_call.1} parent=1 // pred_region
      _
    $region37: #{tpu_custom_call.1} parent=1 // pred_fallthru
      _
    // Predicated region
    $region38: #{tpu_custom_call.1} parent=1 // pred_check
      _
    $region39: #{tpu_custom_call.1} parent=1 // pred_check_branch
      %61 = sbr.rel (0) target = $region41
    $region40: #{tpu_custom_call.1} parent=1 // pred_region
      _
    $region41: #{tpu_custom_call.1} parent=1 // pred_fallthru
      _
    // Predicated region
    $region42: #{tpu_custom_call.1} parent=1 // pred_check
      _
    $region43: #{tpu_custom_call.1} parent=1 // pred_check_branch
      %63 = sbr.rel (0) target = $region45
    $region44: #{tpu_custom_call.1} parent=1 // pred_region
      _
    $region45: #{tpu_custom_call.1} parent=1 // pred_fallthru
      _
    // Predicated region
    $region46: #{tpu_custom_call.1} parent=1 // pred_check
      _
    $region47: #{tpu_custom_call.1} parent=1 // pred_check_branch
      %65 = sbr.rel (0) target = $region49
    $region48: #{tpu_custom_call.1} parent=1 // pred_region
      _
    $region49: #{tpu_custom_call.1} parent=1 // pred_fallthru
      _
    // Predicated region
    $region50: #{tpu_custom_call.1} parent=1 // pred_check
      _
    $region51: #{tpu_custom_call.1} parent=1 // pred_check_branch
      %67 = sbr.rel (0) target = $region53
    $region52: #{tpu_custom_call.1} parent=1 // pred_region
      _
    $region53: #{tpu_custom_call.1} parent=1 // pred_fallthru
      _
    // Predicated region
    $region54: #{tpu_custom_call.1} parent=1 // pred_check
      _
    $region55: #{tpu_custom_call.1} parent=1 // pred_check_branch
      %69 = sbr.rel (0) target = $region57
    $region56: #{tpu_custom_call.1} parent=1 // pred_region
      _
    $region57: #{tpu_custom_call.1} parent=1 // pred_fallthru
      _
    // Predicated region
    $region58: #{tpu_custom_call.1} parent=1 // pred_check
      _
    $region59: #{tpu_custom_call.1} parent=1 // pred_check_branch
      %71 = sbr.rel (0) target = $region61
    $region60: #{tpu_custom_call.1} parent=1 // pred_region
      %72 = dma.done [#allocation3], 256
    $region61: #{tpu_custom_call.1} parent=1 // pred_fallthru
      _
    // Predicated region
    $region62: #{tpu_custom_call.1} parent=1 // pred_check
      _
    $region63: #{tpu_custom_call.1} parent=1 // pred_check_branch
      %74 = sbr.rel (0) target = $region65
    $region64: #{tpu_custom_call.1} parent=1 // pred_region
      %75 = dma.done [#allocation6], 256
    $region65: #{tpu_custom_call.1} parent=1 // pred_fallthru
      _
    %v76 = vld [vmem:[#allocation2] sm:$0xff]
    %v77 = vld [vmem:[#allocation2 + $0x8] sm:$0xff]
    %v78 = vld [vmem:[#allocation5] sm:$0xff]
    %v79 = vld [vmem:[#allocation5 + $0x8] sm:$0xff]
    %v80 = vld [vmem:[%s6] sm:$0x1]
    %v81 = vld [vmem:[%s7] sm:$0x1]
    %vm82 = vcmask 261120
    %v83 = vsel %vm82, %v76, 0.0
    %84 = vadd.xlane.f32.xlu0 %v83
    %v85 = vpop.xlane.xlu0 %84
    %v86 = vsel %vm82, %v77, 0.0
    %87 = vadd.xlane.f32.xlu0 %v86
    %v88 = vpop.xlane.xlu0 %87
    %v89 = vmul.f32 %v85, 0.03125
    %v90 = vmul.f32 %v88, 0.03125
    %v91 = vsub.f32 %v76, %v89
    %v92 = vsub.f32 %v77, %v90
    %v93 = vmul.f32 %v91, %v91
    %v94 = vmul.f32 %v92, %v92
    %v95 = vsel %vm82, %v93, 0.0
    %96 = vadd.xlane.f32.xlu0 %v95
    %v97 = vpop.xlane.xlu0 %96
    %v98 = vsel %vm82, %v94, 0.0
    %99 = vadd.xlane.f32.xlu0 %v98
    %v100 = vpop.xlane.xlu0 %99
    %v101 = vmul.f32 %v97, 0.032258064
    %v102 = vmul.f32 %v100, 0.032258064
    %v103 = vrsqrt.pop %v101
    %v104 = vmul.f32 %v101, %v103
    %vm105 = vcmp.eq.f32.partialorder %v101, inf
    %v106 = vsel %vm105, %v101, %v104
    %vm107 = vcmp.eq.f32.partialorder %v101, 0.0
    %v108 = vand.u32 %v101, 2147483648
    %v109 = vsel %vm107, %v108, %v106
    %v110 = vrsqrt.pop %v102
    %v111 = vmul.f32 %v102, %v110
    %vm112 = vcmp.eq.f32.partialorder %v102, inf
    %v113 = vsel %vm112, %v102, %v111
    %vm114 = vcmp.eq.f32.partialorder %v102, 0.0
    %v115 = vand.u32 %v102, 2147483648
    %v116 = vsel %vm114, %v115, %v113
    %v117 = vadd.f32 %v109, 1e-06
    %v118 = vadd.f32 %v116, 1e-06
    %v119 = vrcp.pop %v117
    %v120 = vrcp.pop %v118
    %v122 = vlaneseq
    %v123 = vshrl.u32 %v122, 7
    %v124 = vsub.s32 0, %v123
    %v125 = vrot.slane %v80, %v124
    %v127 = vmul.f32 %v125, %v91
    %v128 = vmul.f32 %v125, %v92
    %v129 = vmul.f32 %v127, %v119
    %v130 = vmul.f32 %v128, %v120
    %v132 = vlaneseq
    %v133 = vshrl.u32 %v132, 7
    %v134 = vsub.s32 0, %v133
    %v135 = vrot.slane %v81, %v134
    %v137 = vadd.f32 %v129, %v135
    %v138 = vadd.f32 %v130, %v135
    %v139 = vand.u32 2147483647, %v137
    %v140 = vand.u32 2147483647, %v138
    %v141 = vsel %vm82, %v139, -inf
    %v142 = vsel %vm82, %v140, -inf
    %v143 = vmax.f32 %v141, %v142
    %144 = vmax.xlane.f32.xlu0 %v143
    %v145 = vpop.xlane.xlu0 %144
    %v146 = vrot.slane %v145, 4
    %v147 = vmax.f32 %v145, %v146
    %v148 = vrot.slane %v147, 2
    %v149 = vmax.f32 %v147, %v148
    %v150 = vrot.slane %v149, 1
    %v151 = vmax.f32 %v149, %v150
    %s152 = vtos %v151
    %s153 = smul.f32 %s152, 2.0
    %v154 = vrcp.pop 511.0
    %s155 = vtos %v154
    %s156 = smul.f32 %s153, %s155
    %p157 = scmp.eq.f32.partialorder %s156, 0.0
    %s158 = scalar_select %p157, 1e-05, %s156
    %v159 = vstv %s158
    %v160 = vrcp.pop %v159
    %v161 = vmul.f32 %v137, %v160
    %v162 = vmul.f32 %v138, %v160
    %v163 = vround.ne.pseudo %v161
    %v164 = vround.ne.pseudo %v162
    %v165 = vmax.f32 %v163, -256.0
    %v166 = vmax.f32 %v164, -256.0
    %v167 = vmin.f32 %v165, 255.0
    %v168 = vmin.f32 %v166, 255.0
    %v169 = vmul.f32 %v167, %v159
    %v170 = vmul.f32 %v168, %v159
    %v171 = vld [vmem:[%s2] sm:$0xff]
    %v172 = vld [vmem:[%s2 + $0x8] sm:$0xff]
    %v173 = vld [vmem:[%s2 + $0x10] sm:$0xff]
    %v174 = vld [vmem:[%s2 + $0x18] sm:$0xff]
    %v175 = vld [vmem:[%s3] sm:$0x1]
    %v177 = vlaneseq
    %v178 = vshrl.u32 %v177, 7
    %v179 = vsub.s32 0, %v178
    %v180 = vrot.slane %v175, %v179
    %v183 = vsel %vm82, %v169, 0
    %v186 = vsel %vm82, %v170, 0
    %188 = vmatprep.subr.mxu0 0.0
    %189 = vmatpush1.msra.mxu0 %v171
    %190 = vmatprep.subr.mxu0 0.0
    %191 = vmatpush1.msra.mxu0 %v172
    %192 = vmatprep.subr.mxu0 0.0
    %193 = vmatpush1.msra.mxu0 %v173
    %194 = vmatprep.subr.mxu0 0.0
    %195 = vmatpush1.msra.mxu0 %v174
    %196 = vmatprep.subr.mxu0 0.0
    %197 = vmatpush1.msra.mxu0 0.0
    %198 = vmatprep.subr.mxu0 0.0
    %199 = vmatpush1.msra.mxu0 0.0
    %200 = vmatprep.subr.mxu0 0.0
    %201 = vmatpush1.msra.mxu0 0.0
    %202 = vmatprep.subr.mxu0 0.0
    %203 = vmatpush1.msra.mxu0 0.0
    %204 = vmatprep.subr.mxu0 0.0
    %205 = vmatpush1.msra.mxu0 0.0
    %206 = vmatprep.subr.mxu0 0.0
    %207 = vmatpush1.msra.mxu0 0.0
    %208 = vmatprep.subr.mxu0 0.0
    %209 = vmatpush1.msra.mxu0 0.0
    %210 = vmatprep.subr.mxu0 0.0
    %211 = vmatpush1.msra.mxu0 0.0
    %212 = vmatprep.subr.mxu0 0.0
    %213 = vmatpush1.msra.mxu0 0.0
    %214 = vmatprep.subr.mxu0 0.0
    %215 = vmatpush1.msra.mxu0 0.0
    %216 = vmatprep.subr.mxu0 0.0
    %217 = vmatpush1.msra.mxu0 0.0
    %218 = vmatprep.subr.mxu0 0.0
    %219 = vmatpush1.msra.mxu0 0.0
    %220 = vmatprep.subr.mxu0 0.0
    %221 = vmatpush1.msra.mxu0 0.0
    %222 = vmatprep.subr.mxu0 0.0
    %223 = vmatpush1.msra.mxu0 0.0
    %224 = vmatprep.subr.mxu0 0.0
    %225 = vmatpush1.msra.mxu0 0.0
    %226 = vmatprep.subr.mxu0 0.0
    %227 = vmatpush1.msra.mxu0 0.0
    %228 = vmatprep.subr.mxu0 0.0
    %229 = vmatpush1.msra.mxu0 0.0
    %230 = vmatprep.subr.mxu0 0.0
    %231 = vmatpush1.msra.mxu0 0.0
    %232 = vmatprep.subr.mxu0 0.0
    %233 = vmatpush1.msra.mxu0 0.0
    %234 = vmatprep.subr.mxu0 0.0
    %235 = vmatpush1.msra.mxu0 0.0
    %236 = vmatprep.subr.mxu0 0.0
    %237 = vmatpush1.msra.mxu0 0.0
    %238 = vmatprep.subr.mxu0 0.0
    %239 = vmatpush1.msra.mxu0 0.0
    %240 = vmatprep.subr.mxu0 0.0
    %241 = vmatpush1.msra.mxu0 0.0
    %242 = vmatprep.subr.mxu0 0.0
    %243 = vmatpush1.msra.mxu0 0.0
    %244 = vmatprep.subr.mxu0 0.0
    %245 = vmatpush1.msra.mxu0 0.0
    %246 = vmatprep.subr.mxu0 0.0
    %247 = vmatpush1.msra.mxu0 0.0
    %248 = vmatprep.subr.mxu0 0.0
    %249 = vmatpush1.msra.mxu0 0.0
    %250 = vmatprep.subr.mxu0 0.0
    %251 = vmatpush1.msra.mxu0 0.0
    %252 = vmatprep.mubr.f32.mxu0 0.0
    %253 = vmatmul.mubr.f32.gmra.mrb[0].mxu0 %v183
    %v254 = vpop.f32.mrb[0].mxu0
    %v255 = vadd.f32 %v180, %v254
    %v256 = vpop.f32.mrb[0].mxu0
    %257 = vmatprep.mubr.f32.mxu0 0.0
    %258 = vmatmul.mubr.f32.gmra.mrb[0].mxu0 %v186
    %v259 = vpop.f32.mrb[0].mxu0
    %v260 = vadd.f32 %v180, %v259
    %v261 = vpop.f32.mrb[0].mxu0
    %262 = vdwg.mxu0
    %v263 = vld [vmem:[%s4] sm:$0xff]
    %v264 = vld [vmem:[%s4 + $0x8] sm:$0xff]
    %v265 = vld [vmem:[%s4 + $0x10] sm:$0xff]
    %v266 = vld [vmem:[%s4 + $0x18] sm:$0xff]
    %268 = vrot.lane.b32.xlu0 %v255, 96
    %v269 = vpop.permute.xlu0 %268
    %vm270 = vcmask 64512
    %v271 = vsel %vm270, %v255, 0
    %v273 = vsel %vm270, %v269, 0
    %275 = vmatprep.subr.mxu0 0.0
    %276 = vmatpush1.xpose.msra.mxu0 %v273
    %277 = vmatprep.subr.mxu0 0.0
    %278 = vmatpush1.xpose.msra.mxu0 0.0
    %279 = vmatprep.subr.mxu0 0.0
    %280 = vmatpush1.xpose.msra.mxu0 0.0
    %281 = vmatprep.subr.mxu0 0.0
    %282 = vmatpush1.xpose.msra.mxu0 0.0
    %283 = vmatprep.subr.mxu0 0.0
    %284 = vmatpush1.xpose.msra.mxu0 0.0
    %285 = vmatprep.subr.mxu0 0.0
    %286 = vmatpush1.xpose.msra.mxu0 0.0
    %287 = vmatprep.subr.mxu0 0.0
    %288 = vmatpush1.xpose.msra.mxu0 0.0
    %289 = vmatprep.subr.mxu0 0.0
    %290 = vmatpush1.xpose.msra.mxu0 0.0
    %291 = vmatprep.subr.mxu0 0.0
    %292 = vmatpush1.xpose.msra.mxu0 0.0
    %293 = vmatprep.subr.mxu0 0.0
    %294 = vmatpush1.xpose.msra.mxu0 0.0
    %295 = vmatprep.subr.mxu0 0.0
    %296 = vmatpush1.xpose.msra.mxu0 0.0
    %297 = vmatprep.subr.mxu0 0.0
    %298 = vmatpush1.xpose.msra.mxu0 0.0
    %299 = vmatprep.subr.mxu0 0.0
    %300 = vmatpush1.xpose.msra.mxu0 0.0
    %301 = vmatprep.subr.mxu0 0.0
    %302 = vmatpush1.xpose.msra.mxu0 0.0
    %303 = vmatprep.subr.mxu0 0.0
    %304 = vmatpush1.xpose.msra.mxu0 0.0
    %305 = vmatprep.subr.mxu0 0.0
    %306 = vmatpush1.xpose.msra.mxu0 0.0
    %307 = vmatprep.subr.mxu0 0.0
    %308 = vmatpush1.xpose.msra.mxu0 0.0
    %309 = vmatprep.subr.mxu0 0.0
    %310 = vmatpush1.xpose.msra.mxu0 0.0
    %311 = vmatprep.subr.mxu0 0.0
    %312 = vmatpush1.xpose.msra.mxu0 0.0
    %313 = vmatprep.subr.mxu0 0.0
    %314 = vmatpush1.xpose.msra.mxu0 0.0
    %315 = vmatprep.subr.mxu0 0.0
    %316 = vmatpush1.xpose.msra.mxu0 0.0
    %317 = vmatprep.subr.mxu0 0.0
    %318 = vmatpush1.xpose.msra.mxu0 0.0
    %319 = vmatprep.subr.mxu0 0.0
    %320 = vmatpush1.xpose.msra.mxu0 0.0
    %321 = vmatprep.subr.mxu0 0.0
    %322 = vmatpush1.xpose.msra.mxu0 0.0
    %323 = vmatprep.subr.mxu0 0.0
    %324 = vmatpush1.xpose.msra.mxu0 0.0
    %325 = vmatprep.subr.mxu0 0.0
    %326 = vmatpush1.xpose.msra.mxu0 0.0
    %327 = vmatprep.subr.mxu0 0.0
    %328 = vmatpush1.xpose.msra.mxu0 0.0
    %329 = vmatprep.subr.mxu0 0.0
    %330 = vmatpush1.xpose.msra.mxu0 0.0
    %331 = vmatprep.subr.mxu0 0.0
    %332 = vmatpush1.xpose.msra.mxu0 0.0
    %333 = vmatprep.subr.mxu0 0.0
    %334 = vmatpush1.xpose.msra.mxu0 0.0
    %335 = vmatprep.subr.mxu0 0.0
    %336 = vmatpush1.xpose.msra.mxu0 0.0
    %337 = vmatprep.subr.mxu0 0.0
    %338 = vmatpush1.xpose.msra.mxu0 0.0
    %339 = vmatprep.mubr.f32.mxu0 0.0
    %340 = vmatmul.mubr.f32.gmra.mrb[0].mxu0 %v271
    %v341 = vpop.f32.mrb[0].mxu0
    %v342 = vadd.f32 0.0, %v341
    %v343 = vpop.f32.mrb[0].mxu0
    %344 = vdwg.mxu0
    %346 = vrot.lane.b32.xlu0 %v260, 96
    %v347 = vpop.permute.xlu0 %346
    %v348 = vsel %vm270, %v260, 0
    %v350 = vsel %vm270, %v347, 0
    %352 = vmatprep.subr.mxu0 0.0
    %353 = vmatpush1.xpose.msra.mxu0 %v350
    %354 = vmatprep.subr.mxu0 0.0
    %355 = vmatpush1.xpose.msra.mxu0 0.0
    %356 = vmatprep.subr.mxu0 0.0
    %357 = vmatpush1.xpose.msra.mxu0 0.0
    %358 = vmatprep.subr.mxu0 0.0
    %359 = vmatpush1.xpose.msra.mxu0 0.0
    %360 = vmatprep.subr.mxu0 0.0
    %361 = vmatpush1.xpose.msra.mxu0 0.0
    %362 = vmatprep.subr.mxu0 0.0
    %363 = vmatpush1.xpose.msra.mxu0 0.0
    %364 = vmatprep.subr.mxu0 0.0
    %365 = vmatpush1.xpose.msra.mxu0 0.0
    %366 = vmatprep.subr.mxu0 0.0
    %367 = vmatpush1.xpose.msra.mxu0 0.0
    %368 = vmatprep.subr.mxu0 0.0
    %369 = vmatpush1.xpose.msra.mxu0 0.0
    %370 = vmatprep.subr.mxu0 0.0
    %371 = vmatpush1.xpose.msra.mxu0 0.0
    %372 = vmatprep.subr.mxu0 0.0
    %373 = vmatpush1.xpose.msra.mxu0 0.0
    %374 = vmatprep.subr.mxu0 0.0
    %375 = vmatpush1.xpose.msra.mxu0 0.0
    %376 = vmatprep.subr.mxu0 0.0
    %377 = vmatpush1.xpose.msra.mxu0 0.0
    %378 = vmatprep.subr.mxu0 0.0
    %379 = vmatpush1.xpose.msra.mxu0 0.0
    %380 = vmatprep.subr.mxu0 0.0
    %381 = vmatpush1.xpose.msra.mxu0 0.0
    %382 = vmatprep.subr.mxu0 0.0
    %383 = vmatpush1.xpose.msra.mxu0 0.0
    %384 = vmatprep.subr.mxu0 0.0
    %385 = vmatpush1.xpose.msra.mxu0 0.0
    %386 = vmatprep.subr.mxu0 0.0
    %387 = vmatpush1.xpose.msra.mxu0 0.0
    %388 = vmatprep.subr.mxu0 0.0
    %389 = vmatpush1.xpose.msra.mxu0 0.0
    %390 = vmatprep.subr.mxu0 0.0
    %391 = vmatpush1.xpose.msra.mxu0 0.0
    %392 = vmatprep.subr.mxu0 0.0
    %393 = vmatpush1.xpose.msra.mxu0 0.0
    %394 = vmatprep.subr.mxu0 0.0
    %395 = vmatpush1.xpose.msra.mxu0 0.0
    %396 = vmatprep.subr.mxu0 0.0
    %397 = vmatpush1.xpose.msra.mxu0 0.0
    %398 = vmatprep.subr.mxu0 0.0
    %399 = vmatpush1.xpose.msra.mxu0 0.0
    %400 = vmatprep.subr.mxu0 0.0
    %401 = vmatpush1.xpose.msra.mxu0 0.0
    %402 = vmatprep.subr.mxu0 0.0
    %403 = vmatpush1.xpose.msra.mxu0 0.0
    %404 = vmatprep.subr.mxu0 0.0
    %405 = vmatpush1.xpose.msra.mxu0 0.0
    %406 = vmatprep.subr.mxu0 0.0
    %407 = vmatpush1.xpose.msra.mxu0 0.0
    %408 = vmatprep.subr.mxu0 0.0
    %409 = vmatpush1.xpose.msra.mxu0 0.0
    %410 = vmatprep.subr.mxu0 0.0
    %411 = vmatpush1.xpose.msra.mxu0 0.0
    %412 = vmatprep.subr.mxu0 0.0
    %413 = vmatpush1.xpose.msra.mxu0 0.0
    %414 = vmatprep.subr.mxu0 0.0
    %415 = vmatpush1.xpose.msra.mxu0 0.0
    %416 = vmatprep.mubr.f32.mxu0 0.0
    %417 = vmatmul.mubr.f32.gmra.mrb[0].mxu0 %v348
    %v418 = vpop.f32.mrb[0].mxu0
    %v419 = vadd.f32 0.0, %v418
    %v420 = vpop.f32.mrb[0].mxu0
    %421 = vdwg.mxu0
    %v422 = vmul.f32 %v342, 0.35355338
    %v423 = vmul.f32 %v419, 0.35355338
    %v424 = vadd.f32 %v422, %v78
    %v425 = vadd.f32 %v423, %v79
    %v426 = vsel %vm270, %v424, -inf
    %427 = vmax.xlane.f32.xlu0 %v426
    %v428 = vpop.xlane.xlu0 %427
    %v429 = vsel %vm270, %v425, -inf
    %430 = vmax.xlane.f32.xlu0 %v429
    %v431 = vpop.xlane.xlu0 %430
    %v432 = vsub.f32 %v424, %v428
    %v433 = vsub.f32 %v425, %v431
    %v434 = vmul.f32 %v432, 1.442695
    %v435 = vpow.pop %v434
    %v436 = vmul.f32 %v433, 1.442695
    %v437 = vpow.pop %v436
    %v438 = vsel %vm270, %v435, 0.0
    %439 = vadd.xlane.f32.xlu0 %v438
    %v440 = vpop.xlane.xlu0 %439
    %v441 = vsel %vm270, %v437, 0.0
    %442 = vadd.xlane.f32.xlu0 %v441
    %v443 = vpop.xlane.xlu0 %442
    %v444 = vrcp.pop %v440
    %v445 = vrcp.pop %v443
    %v446 = vmul.f32 %v435, %v444
    %v447 = vmul.f32 %v437, %v445
    %448 = vrot.lane.b32.xlu0 %v255, 64
    %v449 = vpop.permute.xlu0 %448
    %v452 = vsel %vm270, %v446, 0
    %454 = vmatprep.subr.mxu0 0.0
    %455 = vmatpush1.msra.mxu0 %v449
    %456 = vmatprep.subr.mxu0 0.0
    %457 = vmatpush1.msra.mxu0 0.0
    %458 = vmatprep.subr.mxu0 0.0
    %459 = vmatpush1.msra.mxu0 0.0
    %460 = vmatprep.subr.mxu0 0.0
    %461 = vmatpush1.msra.mxu0 0.0
    %462 = vmatprep.subr.mxu0 0.0
    %463 = vmatpush1.msra.mxu0 0.0
    %464 = vmatprep.subr.mxu0 0.0
    %465 = vmatpush1.msra.mxu0 0.0
    %466 = vmatprep.subr.mxu0 0.0
    %467 = vmatpush1.msra.mxu0 0.0
    %468 = vmatprep.subr.mxu0 0.0
    %469 = vmatpush1.msra.mxu0 0.0
    %470 = vmatprep.subr.mxu0 0.0
    %471 = vmatpush1.msra.mxu0 0.0
    %472 = vmatprep.subr.mxu0 0.0
    %473 = vmatpush1.msra.mxu0 0.0
    %474 = vmatprep.subr.mxu0 0.0
    %475 = vmatpush1.msra.mxu0 0.0
    %476 = vmatprep.subr.mxu0 0.0
    %477 = vmatpush1.msra.mxu0 0.0
    %478 = vmatprep.subr.mxu0 0.0
    %479 = vmatpush1.msra.mxu0 0.0
    %480 = vmatprep.subr.mxu0 0.0
    %481 = vmatpush1.msra.mxu0 0.0
    %482 = vmatprep.subr.mxu0 0.0
    %483 = vmatpush1.msra.mxu0 0.0
    %484 = vmatprep.subr.mxu0 0.0
    %485 = vmatpush1.msra.mxu0 0.0
    %486 = vmatprep.subr.mxu0 0.0
    %487 = vmatpush1.msra.mxu0 0.0
    %488 = vmatprep.subr.mxu0 0.0
    %489 = vmatpush1.msra.mxu0 0.0
    %490 = vmatprep.subr.mxu0 0.0
    %491 = vmatpush1.msra.mxu0 0.0
    %492 = vmatprep.subr.mxu0 0.0
    %493 = vmatpush1.msra.mxu0 0.0
    %494 = vmatprep.subr.mxu0 0.0
    %495 = vmatpush1.msra.mxu0 0.0
    %496 = vmatprep.subr.mxu0 0.0
    %497 = vmatpush1.msra.mxu0 0.0
    %498 = vmatprep.subr.mxu0 0.0
    %499 = vmatpush1.msra.mxu0 0.0
    %500 = vmatprep.subr.mxu0 0.0
    %501 = vmatpush1.msra.mxu0 0.0
    %502 = vmatprep.subr.mxu0 0.0
    %503 = vmatpush1.msra.mxu0 0.0
    %504 = vmatprep.subr.mxu0 0.0
    %505 = vmatpush1.msra.mxu0 0.0
    %506 = vmatprep.subr.mxu0 0.0
    %507 = vmatpush1.msra.mxu0 0.0
    %508 = vmatprep.subr.mxu0 0.0
    %509 = vmatpush1.msra.mxu0 0.0
    %510 = vmatprep.subr.mxu0 0.0
    %511 = vmatpush1.msra.mxu0 0.0
    %512 = vmatprep.subr.mxu0 0.0
    %513 = vmatpush1.msra.mxu0 0.0
    %514 = vmatprep.subr.mxu0 0.0
    %515 = vmatpush1.msra.mxu0 0.0
    %516 = vmatprep.subr.mxu0 0.0
    %517 = vmatpush1.msra.mxu0 0.0
    %518 = vmatprep.mubr.f32.mxu0 0.0
    %519 = vmatmul.mubr.f32.gmra.mrb[0].mxu0 %v452
    %v520 = vpop.f32.mrb[0].mxu0
    %v521 = vadd.f32 0.0, %v520
    %v522 = vpop.f32.mrb[0].mxu0
    %523 = vdwg.mxu0
    %524 = vrot.lane.b32.xlu0 %v260, 64
    %v525 = vpop.permute.xlu0 %524
    %v528 = vsel %vm270, %v447, 0
    %530 = vmatprep.subr.mxu0 0.0
    %531 = vmatpush1.msra.mxu0 %v525
    %532 = vmatprep.subr.mxu0 0.0
    %533 = vmatpush1.msra.mxu0 0.0
    %534 = vmatprep.subr.mxu0 0.0
    %535 = vmatpush1.msra.mxu0 0.0
    %536 = vmatprep.subr.mxu0 0.0
    %537 = vmatpush1.msra.mxu0 0.0
    %538 = vmatprep.subr.mxu0 0.0
    %539 = vmatpush1.msra.mxu0 0.0
    %540 = vmatprep.subr.mxu0 0.0
    %541 = vmatpush1.msra.mxu0 0.0
    %542 = vmatprep.subr.mxu0 0.0
    %543 = vmatpush1.msra.mxu0 0.0
    %544 = vmatprep.subr.mxu0 0.0
    %545 = vmatpush1.msra.mxu0 0.0
    %546 = vmatprep.subr.mxu0 0.0
    %547 = vmatpush1.msra.mxu0 0.0
    %548 = vmatprep.subr.mxu0 0.0
    %549 = vmatpush1.msra.mxu0 0.0
    %550 = vmatprep.subr.mxu0 0.0
    %551 = vmatpush1.msra.mxu0 0.0
    %552 = vmatprep.subr.mxu0 0.0
    %553 = vmatpush1.msra.mxu0 0.0
    %554 = vmatprep.subr.mxu0 0.0
    %555 = vmatpush1.msra.mxu0 0.0
    %556 = vmatprep.subr.mxu0 0.0
    %557 = vmatpush1.msra.mxu0 0.0
    %558 = vmatprep.subr.mxu0 0.0
    %559 = vmatpush1.msra.mxu0 0.0
    %560 = vmatprep.subr.mxu0 0.0
    %561 = vmatpush1.msra.mxu0 0.0
    %562 = vmatprep.subr.mxu0 0.0
    %563 = vmatpush1.msra.mxu0 0.0
    %564 = vmatprep.subr.mxu0 0.0
    %565 = vmatpush1.msra.mxu0 0.0
    %566 = vmatprep.subr.mxu0 0.0
    %567 = vmatpush1.msra.mxu0 0.0
    %568 = vmatprep.subr.mxu0 0.0
    %569 = vmatpush1.msra.mxu0 0.0
    %570 = vmatprep.subr.mxu0 0.0
    %571 = vmatpush1.msra.mxu0 0.0
    %572 = vmatprep.subr.mxu0 0.0
    %573 = vmatpush1.msra.mxu0 0.0
    %574 = vmatprep.subr.mxu0 0.0
    %575 = vmatpush1.msra.mxu0 0.0
    %576 = vmatprep.subr.mxu0 0.0
    %577 = vmatpush1.msra.mxu0 0.0
    %578 = vmatprep.subr.mxu0 0.0
    %579 = vmatpush1.msra.mxu0 0.0
    %580 = vmatprep.subr.mxu0 0.0
    %581 = vmatpush1.msra.mxu0 0.0
    %582 = vmatprep.subr.mxu0 0.0
    %583 = vmatpush1.msra.mxu0 0.0
    %584 = vmatprep.subr.mxu0 0.0
    %585 = vmatpush1.msra.mxu0 0.0
    %586 = vmatprep.subr.mxu0 0.0
    %587 = vmatpush1.msra.mxu0 0.0
    %588 = vmatprep.subr.mxu0 0.0
    %589 = vmatpush1.msra.mxu0 0.0
    %590 = vmatprep.subr.mxu0 0.0
    %591 = vmatpush1.msra.mxu0 0.0
    %592 = vmatprep.subr.mxu0 0.0
    %593 = vmatpush1.msra.mxu0 0.0
    %594 = vmatprep.mubr.f32.mxu0 0.0
    %595 = vmatmul.mubr.f32.gmra.mrb[0].mxu0 %v528
    %v596 = vpop.f32.mrb[0].mxu0
    %v597 = vadd.f32 0.0, %v596
    %v598 = vpop.f32.mrb[0].mxu0
    %599 = vdwg.mxu0
    %v600 = vand.u32 2147483647, %v521
    %v601 = vand.u32 2147483647, %v597
    %v602 = vsel %vm270, %v600, -inf
    %v603 = vsel %vm270, %v601, -inf
    %v604 = vmax.f32 %v602, %v603
    %605 = vmax.xlane.f32.xlu0 %v604
    %v606 = vpop.xlane.xlu0 %605
    %v607 = vrot.slane %v606, 4
    %v608 = vmax.f32 %v606, %v607
    %v609 = vrot.slane %v608, 2
    %v610 = vmax.f32 %v608, %v609
    %v611 = vrot.slane %v610, 1
    %v612 = vmax.f32 %v610, %v611
    %s613 = vtos %v612
    %s614 = smax.f32 %s613, 0.0
    %615 = vrot.lane.b32.xlu0 %v255, 120
    %v616 = vpop.permute.xlu0 %615
    %617 = vrot.lane.b32.xlu0 %v255, 88
    %v618 = vpop.permute.xlu0 %617
    %v619 = vsel %vm270, %v616, 0
    %v621 = vsel %vm270, %v618, 0
    %623 = vmatprep.subr.mxu0 0.0
    %624 = vmatpush1.xpose.msra.mxu0 %v621
    %625 = vmatprep.subr.mxu0 0.0
    %626 = vmatpush1.xpose.msra.mxu0 0.0
    %627 = vmatprep.subr.mxu0 0.0
    %628 = vmatpush1.xpose.msra.mxu0 0.0
    %629 = vmatprep.subr.mxu0 0.0
    %630 = vmatpush1.xpose.msra.mxu0 0.0
    %631 = vmatprep.subr.mxu0 0.0
    %632 = vmatpush1.xpose.msra.mxu0 0.0
    %633 = vmatprep.subr.mxu0 0.0
    %634 = vmatpush1.xpose.msra.mxu0 0.0
    %635 = vmatprep.subr.mxu0 0.0
    %636 = vmatpush1.xpose.msra.mxu0 0.0
    %637 = vmatprep.subr.mxu0 0.0
    %638 = vmatpush1.xpose.msra.mxu0 0.0
    %639 = vmatprep.subr.mxu0 0.0
    %640 = vmatpush1.xpose.msra.mxu0 0.0
    %641 = vmatprep.subr.mxu0 0.0
    %642 = vmatpush1.xpose.msra.mxu0 0.0
    %643 = vmatprep.subr.mxu0 0.0
    %644 = vmatpush1.xpose.msra.mxu0 0.0
    %645 = vmatprep.subr.mxu0 0.0
    %646 = vmatpush1.xpose.msra.mxu0 0.0
    %647 = vmatprep.subr.mxu0 0.0
    %648 = vmatpush1.xpose.msra.mxu0 0.0
    %649 = vmatprep.subr.mxu0 0.0
    %650 = vmatpush1.xpose.msra.mxu0 0.0
    %651 = vmatprep.subr.mxu0 0.0
    %652 = vmatpush1.xpose.msra.mxu0 0.0
    %653 = vmatprep.subr.mxu0 0.0
    %654 = vmatpush1.xpose.msra.mxu0 0.0
    %655 = vmatprep.subr.mxu0 0.0
    %656 = vmatpush1.xpose.msra.mxu0 0.0
    %657 = vmatprep.subr.mxu0 0.0
    %658 = vmatpush1.xpose.msra.mxu0 0.0
    %659 = vmatprep.subr.mxu0 0.0
    %660 = vmatpush1.xpose.msra.mxu0 0.0
    %661 = vmatprep.subr.mxu0 0.0
    %662 = vmatpush1.xpose.msra.mxu0 0.0
    %663 = vmatprep.subr.mxu0 0.0
    %664 = vmatpush1.xpose.msra.mxu0 0.0
    %665 = vmatprep.subr.mxu0 0.0
    %666 = vmatpush1.xpose.msra.mxu0 0.0
    %667 = vmatprep.subr.mxu0 0.0
    %668 = vmatpush1.xpose.msra.mxu0 0.0
    %669 = vmatprep.subr.mxu0 0.0
    %670 = vmatpush1.xpose.msra.mxu0 0.0
    %671 = vmatprep.subr.mxu0 0.0
    %672 = vmatpush1.xpose.msra.mxu0 0.0
    %673 = vmatprep.subr.mxu0 0.0
    %674 = vmatpush1.xpose.msra.mxu0 0.0
    %675 = vmatprep.subr.mxu0 0.0
    %676 = vmatpush1.xpose.msra.mxu0 0.0
    %677 = vmatprep.subr.mxu0 0.0
    %678 = vmatpush1.xpose.msra.mxu0 0.0
    %679 = vmatprep.subr.mxu0 0.0
    %680 = vmatpush1.xpose.msra.mxu0 0.0
    %681 = vmatprep.subr.mxu0 0.0
    %682 = vmatpush1.xpose.msra.mxu0 0.0
    %683 = vmatprep.subr.mxu0 0.0
    %684 = vmatpush1.xpose.msra.mxu0 0.0
    %685 = vmatprep.subr.mxu0 0.0
    %686 = vmatpush1.xpose.msra.mxu0 0.0
    %687 = vmatprep.mubr.f32.mxu0 0.0
    %688 = vmatmul.mubr.f32.gmra.mrb[0].mxu0 %v619
    %v689 = vpop.f32.mrb[0].mxu0
    %v690 = vadd.f32 0.0, %v689
    %v691 = vpop.f32.mrb[0].mxu0
    %692 = vdwg.mxu0
    %693 = vrot.lane.b32.xlu0 %v260, 120
    %v694 = vpop.permute.xlu0 %693
    %695 = vrot.lane.b32.xlu0 %v260, 88
    %v696 = vpop.permute.xlu0 %695
    %v697 = vsel %vm270, %v694, 0
    %v699 = vsel %vm270, %v696, 0
    %701 = vmatprep.subr.mxu0 0.0
    %702 = vmatpush1.xpose.msra.mxu0 %v699
    %703 = vmatprep.subr.mxu0 0.0
    %704 = vmatpush1.xpose.msra.mxu0 0.0
    %705 = vmatprep.subr.mxu0 0.0
    %706 = vmatpush1.xpose.msra.mxu0 0.0
    %707 = vmatprep.subr.mxu0 0.0
    %708 = vmatpush1.xpose.msra.mxu0 0.0
    %709 = vmatprep.subr.mxu0 0.0
    %710 = vmatpush1.xpose.msra.mxu0 0.0
    %711 = vmatprep.subr.mxu0 0.0
    %712 = vmatpush1.xpose.msra.mxu0 0.0
    %713 = vmatprep.subr.mxu0 0.0
    %714 = vmatpush1.xpose.msra.mxu0 0.0
    %715 = vmatprep.subr.mxu0 0.0
    %716 = vmatpush1.xpose.msra.mxu0 0.0
    %717 = vmatprep.subr.mxu0 0.0
    %718 = vmatpush1.xpose.msra.mxu0 0.0
    %719 = vmatprep.subr.mxu0 0.0
    %720 = vmatpush1.xpose.msra.mxu0 0.0
    %721 = vmatprep.subr.mxu0 0.0
    %722 = vmatpush1.xpose.msra.mxu0 0.0
    %723 = vmatprep.subr.mxu0 0.0
    %724 = vmatpush1.xpose.msra.mxu0 0.0
    %725 = vmatprep.subr.mxu0 0.0
    %726 = vmatpush1.xpose.msra.mxu0 0.0
    %727 = vmatprep.subr.mxu0 0.0
    %728 = vmatpush1.xpose.msra.mxu0 0.0
    %729 = vmatprep.subr.mxu0 0.0
    %730 = vmatpush1.xpose.msra.mxu0 0.0
    %731 = vmatprep.subr.mxu0 0.0
    %732 = vmatpush1.xpose.msra.mxu0 0.0
    %733 = vmatprep.subr.mxu0 0.0
    %734 = vmatpush1.xpose.msra.mxu0 0.0
    %735 = vmatprep.subr.mxu0 0.0
    %736 = vmatpush1.xpose.msra.mxu0 0.0
    %737 = vmatprep.subr.mxu0 0.0
    %738 = vmatpush1.xpose.msra.mxu0 0.0
    %739 = vmatprep.subr.mxu0 0.0
    %740 = vmatpush1.xpose.msra.mxu0 0.0
    %741 = vmatprep.subr.mxu0 0.0
    %742 = vmatpush1.xpose.msra.mxu0 0.0
    %743 = vmatprep.subr.mxu0 0.0
    %744 = vmatpush1.xpose.msra.mxu0 0.0
    %745 = vmatprep.subr.mxu0 0.0
    %746 = vmatpush1.xpose.msra.mxu0 0.0
    %747 = vmatprep.subr.mxu0 0.0
    %748 = vmatpush1.xpose.msra.mxu0 0.0
    %749 = vmatprep.subr.mxu0 0.0
    %750 = vmatpush1.xpose.msra.mxu0 0.0
    %751 = vmatprep.subr.mxu0 0.0
    %752 = vmatpush1.xpose.msra.mxu0 0.0
    %753 = vmatprep.subr.mxu0 0.0
    %754 = vmatpush1.xpose.msra.mxu0 0.0
    %755 = vmatprep.subr.mxu0 0.0
    %756 = vmatpush1.xpose.msra.mxu0 0.0
    %757 = vmatprep.subr.mxu0 0.0
    %758 = vmatpush1.xpose.msra.mxu0 0.0
    %759 = vmatprep.subr.mxu0 0.0
    %760 = vmatpush1.xpose.msra.mxu0 0.0
    %761 = vmatprep.subr.mxu0 0.0
    %762 = vmatpush1.xpose.msra.mxu0 0.0
    %763 = vmatprep.subr.mxu0 0.0
    %764 = vmatpush1.xpose.msra.mxu0 0.0
    %765 = vmatprep.mubr.f32.mxu0 0.0
    %766 = vmatmul.mubr.f32.gmra.mrb[0].mxu0 %v697
    %v767 = vpop.f32.mrb[0].mxu0
    %v768 = vadd.f32 0.0, %v767
    %v769 = vpop.f32.mrb[0].mxu0
    %770 = vdwg.mxu0
    %v771 = vmul.f32 %v690, 0.35355338
    %v772 = vmul.f32 %v768, 0.35355338
    %v773 = vadd.f32 %v771, %v78
    %v774 = vadd.f32 %v772, %v79
    %v775 = vsel %vm270, %v773, -inf
    %776 = vmax.xlane.f32.xlu0 %v775
    %v777 = vpop.xlane.xlu0 %776
    %v778 = vsel %vm270, %v774, -inf
    %779 = vmax.xlane.f32.xlu0 %v778
    %v780 = vpop.xlane.xlu0 %779
    %v781 = vsub.f32 %v773, %v777
    %v782 = vsub.f32 %v774, %v780
    %v783 = vmul.f32 %v781, 1.442695
    %v784 = vpow.pop %v783
    %v785 = vmul.f32 %v782, 1.442695
    %v786 = vpow.pop %v785
    %v787 = vsel %vm270, %v784, 0.0
    %788 = vadd.xlane.f32.xlu0 %v787
    %v789 = vpop.xlane.xlu0 %788
    %v790 = vsel %vm270, %v786, 0.0
    %791 = vadd.xlane.f32.xlu0 %v790
    %v792 = vpop.xlane.xlu0 %791
    %v793 = vrcp.pop %v789
    %v794 = vrcp.pop %v792
    %v795 = vmul.f32 %v784, %v793
    %v796 = vmul.f32 %v786, %v794
    %797 = vrot.lane.b32.xlu0 %v255, 56
    %v798 = vpop.permute.xlu0 %797
    %v801 = vsel %vm270, %v795, 0
    %803 = vmatprep.subr.mxu0 0.0
    %804 = vmatpush1.msra.mxu0 %v798
    %805 = vmatprep.subr.mxu0 0.0
    %806 = vmatpush1.msra.mxu0 0.0
    %807 = vmatprep.subr.mxu0 0.0
    %808 = vmatpush1.msra.mxu0 0.0
    %809 = vmatprep.subr.mxu0 0.0
    %810 = vmatpush1.msra.mxu0 0.0
    %811 = vmatprep.subr.mxu0 0.0
    %812 = vmatpush1.msra.mxu0 0.0
    %813 = vmatprep.subr.mxu0 0.0
    %814 = vmatpush1.msra.mxu0 0.0
    %815 = vmatprep.subr.mxu0 0.0
    %816 = vmatpush1.msra.mxu0 0.0
    %817 = vmatprep.subr.mxu0 0.0
    %818 = vmatpush1.msra.mxu0 0.0
    %819 = vmatprep.subr.mxu0 0.0
    %820 = vmatpush1.msra.mxu0 0.0
    %821 = vmatprep.subr.mxu0 0.0
    %822 = vmatpush1.msra.mxu0 0.0
    %823 = vmatprep.subr.mxu0 0.0
    %824 = vmatpush1.msra.mxu0 0.0
    %825 = vmatprep.subr.mxu0 0.0
    %826 = vmatpush1.msra.mxu0 0.0
    %827 = vmatprep.subr.mxu0 0.0
    %828 = vmatpush1.msra.mxu0 0.0
    %829 = vmatprep.subr.mxu0 0.0
    %830 = vmatpush1.msra.mxu0 0.0
    %831 = vmatprep.subr.mxu0 0.0
    %832 = vmatpush1.msra.mxu0 0.0
    %833 = vmatprep.subr.mxu0 0.0
    %834 = vmatpush1.msra.mxu0 0.0
    %835 = vmatprep.subr.mxu0 0.0
    %836 = vmatpush1.msra.mxu0 0.0
    %837 = vmatprep.subr.mxu0 0.0
    %838 = vmatpush1.msra.mxu0 0.0
    %839 = vmatprep.subr.mxu0 0.0
    %840 = vmatpush1.msra.mxu0 0.0
    %841 = vmatprep.subr.mxu0 0.0
    %842 = vmatpush1.msra.mxu0 0.0
    %843 = vmatprep.subr.mxu0 0.0
    %844 = vmatpush1.msra.mxu0 0.0
    %845 = vmatprep.subr.mxu0 0.0
    %846 = vmatpush1.msra.mxu0 0.0
    %847 = vmatprep.subr.mxu0 0.0
    %848 = vmatpush1.msra.mxu0 0.0
    %849 = vmatprep.subr.mxu0 0.0
    %850 = vmatpush1.msra.mxu0 0.0
    %851 = vmatprep.subr.mxu0 0.0
    %852 = vmatpush1.msra.mxu0 0.0
    %853 = vmatprep.subr.mxu0 0.0
    %854 = vmatpush1.msra.mxu0 0.0
    %855 = vmatprep.subr.mxu0 0.0
    %856 = vmatpush1.msra.mxu0 0.0
    %857 = vmatprep.subr.mxu0 0.0
    %858 = vmatpush1.msra.mxu0 0.0
    %859 = vmatprep.subr.mxu0 0.0
    %860 = vmatpush1.msra.mxu0 0.0
    %861 = vmatprep.subr.mxu0 0.0
    %862 = vmatpush1.msra.mxu0 0.0
    %863 = vmatprep.subr.mxu0 0.0
    %864 = vmatpush1.msra.mxu0 0.0
    %865 = vmatprep.subr.mxu0 0.0
    %866 = vmatpush1.msra.mxu0 0.0
    %867 = vmatprep.mubr.f32.mxu0 0.0
    %868 = vmatmul.mubr.f32.gmra.mrb[0].mxu0 %v801
    %v869 = vpop.f32.mrb[0].mxu0
    %v870 = vadd.f32 0.0, %v869
    %v871 = vpop.f32.mrb[0].mxu0
    %872 = vdwg.mxu0
    %873 = vrot.lane.b32.xlu0 %v260, 56
    %v874 = vpop.permute.xlu0 %873
    %v877 = vsel %vm270, %v796, 0
    %879 = vmatprep.subr.mxu0 0.0
    %880 = vmatpush1.msra.mxu0 %v874
    %881 = vmatprep.subr.mxu0 0.0
    %882 = vmatpush1.msra.mxu0 0.0
    %883 = vmatprep.subr.mxu0 0.0
    %884 = vmatpush1.msra.mxu0 0.0
    %885 = vmatprep.subr.mxu0 0.0
    %886 = vmatpush1.msra.mxu0 0.0
    %887 = vmatprep.subr.mxu0 0.0
    %888 = vmatpush1.msra.mxu0 0.0
    %889 = vmatprep.subr.mxu0 0.0
    %890 = vmatpush1.msra.mxu0 0.0
    %891 = vmatprep.subr.mxu0 0.0
    %892 = vmatpush1.msra.mxu0 0.0
    %893 = vmatprep.subr.mxu0 0.0
    %894 = vmatpush1.msra.mxu0 0.0
    %895 = vmatprep.subr.mxu0 0.0
    %896 = vmatpush1.msra.mxu0 0.0
    %897 = vmatprep.subr.mxu0 0.0
    %898 = vmatpush1.msra.mxu0 0.0
    %899 = vmatprep.subr.mxu0 0.0
    %900 = vmatpush1.msra.mxu0 0.0
    %901 = vmatprep.subr.mxu0 0.0
    %902 = vmatpush1.msra.mxu0 0.0
    %903 = vmatprep.subr.mxu0 0.0
    %904 = vmatpush1.msra.mxu0 0.0
    %905 = vmatprep.subr.mxu0 0.0
    %906 = vmatpush1.msra.mxu0 0.0
    %907 = vmatprep.subr.mxu0 0.0
    %908 = vmatpush1.msra.mxu0 0.0
    %909 = vmatprep.subr.mxu0 0.0
    %910 = vmatpush1.msra.mxu0 0.0
    %911 = vmatprep.subr.mxu0 0.0
    %912 = vmatpush1.msra.mxu0 0.0
    %913 = vmatprep.subr.mxu0 0.0
    %914 = vmatpush1.msra.mxu0 0.0
    %915 = vmatprep.subr.mxu0 0.0
    %916 = vmatpush1.msra.mxu0 0.0
    %917 = vmatprep.subr.mxu0 0.0
    %918 = vmatpush1.msra.mxu0 0.0
    %919 = vmatprep.subr.mxu0 0.0
    %920 = vmatpush1.msra.mxu0 0.0
    %921 = vmatprep.subr.mxu0 0.0
    %922 = vmatpush1.msra.mxu0 0.0
    %923 = vmatprep.subr.mxu0 0.0
    %924 = vmatpush1.msra.mxu0 0.0
    %925 = vmatprep.subr.mxu0 0.0
    %926 = vmatpush1.msra.mxu0 0.0
    %927 = vmatprep.subr.mxu0 0.0
    %928 = vmatpush1.msra.mxu0 0.0
    %929 = vmatprep.subr.mxu0 0.0
    %930 = vmatpush1.msra.mxu0 0.0
    %931 = vmatprep.subr.mxu0 0.0
    %932 = vmatpush1.msra.mxu0 0.0
    %933 = vmatprep.subr.mxu0 0.0
    %934 = vmatpush1.msra.mxu0 0.0
    %935 = vmatprep.subr.mxu0 0.0
    %936 = vmatpush1.msra.mxu0 0.0
    %937 = vmatprep.subr.mxu0 0.0
    %938 = vmatpush1.msra.mxu0 0.0
    %939 = vmatprep.subr.mxu0 0.0
    %940 = vmatpush1.msra.mxu0 0.0
    %941 = vmatprep.subr.mxu0 0.0
    %942 = vmatpush1.msra.mxu0 0.0
    %943 = vmatprep.mubr.f32.mxu0 0.0
    %944 = vmatmul.mubr.f32.gmra.mrb[0].mxu0 %v877
    %v945 = vpop.f32.mrb[0].mxu0
    %v946 = vadd.f32 0.0, %v945
    %v947 = vpop.f32.mrb[0].mxu0
    %948 = vdwg.mxu0
    %v949 = vand.u32 2147483647, %v870
    %v950 = vand.u32 2147483647, %v946
    %v951 = vsel %vm270, %v949, -inf
    %v952 = vsel %vm270, %v950, -inf
    %v953 = vmax.f32 %v951, %v952
    %954 = vmax.xlane.f32.xlu0 %v953
    %v955 = vpop.xlane.xlu0 %954
    %v956 = vrot.slane %v955, 4
    %v957 = vmax.f32 %v955, %v956
    %v958 = vrot.slane %v957, 2
    %v959 = vmax.f32 %v957, %v958
    %v960 = vrot.slane %v959, 1
    %v961 = vmax.f32 %v959, %v960
    %s962 = vtos %v961
    %s963 = smax.f32 %s614, %s962
    %964 = vrot.lane.b32.xlu0 %v255, 112
    %v965 = vpop.permute.xlu0 %964
    %966 = vrot.lane.b32.xlu0 %v255, 80
    %v967 = vpop.permute.xlu0 %966
    %v968 = vsel %vm270, %v965, 0
    %v970 = vsel %vm270, %v967, 0
    %972 = vmatprep.subr.mxu0 0.0
    %973 = vmatpush1.xpose.msra.mxu0 %v970
    %974 = vmatprep.subr.mxu0 0.0
    %975 = vmatpush1.xpose.msra.mxu0 0.0
    %976 = vmatprep.subr.mxu0 0.0
    %977 = vmatpush1.xpose.msra.mxu0 0.0
    %978 = vmatprep.subr.mxu0 0.0
    %979 = vmatpush1.xpose.msra.mxu0 0.0
    %980 = vmatprep.subr.mxu0 0.0
    %981 = vmatpush1.xpose.msra.mxu0 0.0
    %982 = vmatprep.subr.mxu0 0.0
    %983 = vmatpush1.xpose.msra.mxu0 0.0
    %984 = vmatprep.subr.mxu0 0.0
    %985 = vmatpush1.xpose.msra.mxu0 0.0
    %986 = vmatprep.subr.mxu0 0.0
    %987 = vmatpush1.xpose.msra.mxu0 0.0
    %988 = vmatprep.subr.mxu0 0.0
    %989 = vmatpush1.xpose.msra.mxu0 0.0
    %990 = vmatprep.subr.mxu0 0.0
    %991 = vmatpush1.xpose.msra.mxu0 0.0
    %992 = vmatprep.subr.mxu0 0.0
    %993 = vmatpush1.xpose.msra.mxu0 0.0
    %994 = vmatprep.subr.mxu0 0.0
    %995 = vmatpush1.xpose.msra.mxu0 0.0
    %996 = vmatprep.subr.mxu0 0.0
    %997 = vmatpush1.xpose.msra.mxu0 0.0
    %998 = vmatprep.subr.mxu0 0.0
    %999 = vmatpush1.xpose.msra.mxu0 0.0
    %1000 = vmatprep.subr.mxu0 0.0
    %1001 = vmatpush1.xpose.msra.mxu0 0.0
    %1002 = vmatprep.subr.mxu0 0.0
    %1003 = vmatpush1.xpose.msra.mxu0 0.0
    %1004 = vmatprep.subr.mxu0 0.0
    %1005 = vmatpush1.xpose.msra.mxu0 0.0
    %1006 = vmatprep.subr.mxu0 0.0
    %1007 = vmatpush1.xpose.msra.mxu0 0.0
    %1008 = vmatprep.subr.mxu0 0.0
    %1009 = vmatpush1.xpose.msra.mxu0 0.0
    %1010 = vmatprep.subr.mxu0 0.0
    %1011 = vmatpush1.xpose.msra.mxu0 0.0
    %1012 = vmatprep.subr.mxu0 0.0
    %1013 = vmatpush1.xpose.msra.mxu0 0.0
    %1014 = vmatprep.subr.mxu0 0.0
    %1015 = vmatpush1.xpose.msra.mxu0 0.0
    %1016 = vmatprep.subr.mxu0 0.0
    %1017 = vmatpush1.xpose.msra.mxu0 0.0
    %1018 = vmatprep.subr.mxu0 0.0
    %1019 = vmatpush1.xpose.msra.mxu0 0.0
    %1020 = vmatprep.subr.mxu0 0.0
    %1021 = vmatpush1.xpose.msra.mxu0 0.0
    %1022 = vmatprep.subr.mxu0 0.0
    %1023 = vmatpush1.xpose.msra.mxu0 0.0
    %1024 = vmatprep.subr.mxu0 0.0
    %1025 = vmatpush1.xpose.msra.mxu0 0.0
    %1026 = vmatprep.subr.mxu0 0.0
    %1027 = vmatpush1.xpose.msra.mxu0 0.0
    %1028 = vmatprep.subr.mxu0 0.0
    %1029 = vmatpush1.xpose.msra.mxu0 0.0
    %1030 = vmatprep.subr.mxu0 0.0
    %1031 = vmatpush1.xpose.msra.mxu0 0.0
    %1032 = vmatprep.subr.mxu0 0.0
    %1033 = vmatpush1.xpose.msra.mxu0 0.0
    %1034 = vmatprep.subr.mxu0 0.0
    %1035 = vmatpush1.xpose.msra.mxu0 0.0
    %1036 = vmatprep.mubr.f32.mxu0 0.0
    %1037 = vmatmul.mubr.f32.gmra.mrb[0].mxu0 %v968
    %v1038 = vpop.f32.mrb[0].mxu0
    %v1039 = vadd.f32 0.0, %v1038
    %v1040 = vpop.f32.mrb[0].mxu0
    %1041 = vdwg.mxu0
    %1042 = vrot.lane.b32.xlu0 %v260, 112
    %v1043 = vpop.permute.xlu0 %1042
    %1044 = vrot.lane.b32.xlu0 %v260, 80
    %v1045 = vpop.permute.xlu0 %1044
    %v1046 = vsel %vm270, %v1043, 0
    %v1048 = vsel %vm270, %v1045, 0
    %1050 = vmatprep.subr.mxu0 0.0
    %1051 = vmatpush1.xpose.msra.mxu0 %v1048
    %1052 = vmatprep.subr.mxu0 0.0
    %1053 = vmatpush1.xpose.msra.mxu0 0.0
    %1054 = vmatprep.subr.mxu0 0.0
    %1055 = vmatpush1.xpose.msra.mxu0 0.0
    %1056 = vmatprep.subr.mxu0 0.0
    %1057 = vmatpush1.xpose.msra.mxu0 0.0
    %1058 = vmatprep.subr.mxu0 0.0
    %1059 = vmatpush1.xpose.msra.mxu0 0.0
    %1060 = vmatprep.subr.mxu0 0.0
    %1061 = vmatpush1.xpose.msra.mxu0 0.0
    %1062 = vmatprep.subr.mxu0 0.0
    %1063 = vmatpush1.xpose.msra.mxu0 0.0
    %1064 = vmatprep.subr.mxu0 0.0
    %1065 = vmatpush1.xpose.msra.mxu0 0.0
    %1066 = vmatprep.subr.mxu0 0.0
    %1067 = vmatpush1.xpose.msra.mxu0 0.0
    %1068 = vmatprep.subr.mxu0 0.0
    %1069 = vmatpush1.xpose.msra.mxu0 0.0
    %1070 = vmatprep.subr.mxu0 0.0
    %1071 = vmatpush1.xpose.msra.mxu0 0.0
    %1072 = vmatprep.subr.mxu0 0.0
    %1073 = vmatpush1.xpose.msra.mxu0 0.0
    %1074 = vmatprep.subr.mxu0 0.0
    %1075 = vmatpush1.xpose.msra.mxu0 0.0
    %1076 = vmatprep.subr.mxu0 0.0
    %1077 = vmatpush1.xpose.msra.mxu0 0.0
    %1078 = vmatprep.subr.mxu0 0.0
    %1079 = vmatpush1.xpose.msra.mxu0 0.0
    %1080 = vmatprep.subr.mxu0 0.0
    %1081 = vmatpush1.xpose.msra.mxu0 0.0
    %1082 = vmatprep.subr.mxu0 0.0
    %1083 = vmatpush1.xpose.msra.mxu0 0.0
    %1084 = vmatprep.subr.mxu0 0.0
    %1085 = vmatpush1.xpose.msra.mxu0 0.0
    %1086 = vmatprep.subr.mxu0 0.0
    %1087 = vmatpush1.xpose.msra.mxu0 0.0
    %1088 = vmatprep.subr.mxu0 0.0
    %1089 = vmatpush1.xpose.msra.mxu0 0.0
    %1090 = vmatprep.subr.mxu0 0.0
    %1091 = vmatpush1.xpose.msra.mxu0 0.0
    %1092 = vmatprep.subr.mxu0 0.0
    %1093 = vmatpush1.xpose.msra.mxu0 0.0
    %1094 = vmatprep.subr.mxu0 0.0
    %1095 = vmatpush1.xpose.msra.mxu0 0.0
    %1096 = vmatprep.subr.mxu0 0.0
    %1097 = vmatpush1.xpose.msra.mxu0 0.0
    %1098 = vmatprep.subr.mxu0 0.0
    %1099 = vmatpush1.xpose.msra.mxu0 0.0
    %1100 = vmatprep.subr.mxu0 0.0
    %1101 = vmatpush1.xpose.msra.mxu0 0.0
    %1102 = vmatprep.subr.mxu0 0.0
    %1103 = vmatpush1.xpose.msra.mxu0 0.0
    %1104 = vmatprep.subr.mxu0 0.0
    %1105 = vmatpush1.xpose.msra.mxu0 0.0
    %1106 = vmatprep.subr.mxu0 0.0
    %1107 = vmatpush1.xpose.msra.mxu0 0.0
    %1108 = vmatprep.subr.mxu0 0.0
    %1109 = vmatpush1.xpose.msra.mxu0 0.0
    %1110 = vmatprep.subr.mxu0 0.0
    %1111 = vmatpush1.xpose.msra.mxu0 0.0
    %1112 = vmatprep.subr.mxu0 0.0
    %1113 = vmatpush1.xpose.msra.mxu0 0.0
    %1114 = vmatprep.mubr.f32.mxu0 0.0
    %1115 = vmatmul.mubr.f32.gmra.mrb[0].mxu0 %v1046
    %v1116 = vpop.f32.mrb[0].mxu0
    %v1117 = vadd.f32 0.0, %v1116
    %v1118 = vpop.f32.mrb[0].mxu0
    %1119 = vdwg.mxu0
    %v1120 = vmul.f32 %v1039, 0.35355338
    %v1121 = vmul.f32 %v1117, 0.35355338
    %v1122 = vadd.f32 %v1120, %v78
    %v1123 = vadd.f32 %v1121, %v79
    %v1124 = vsel %vm270, %v1122, -inf
    %1125 = vmax.xlane.f32.xlu0 %v1124
    %v1126 = vpop.xlane.xlu0 %1125
    %v1127 = vsel %vm270, %v1123, -inf
    %1128 = vmax.xlane.f32.xlu0 %v1127
    %v1129 = vpop.xlane.xlu0 %1128
    %v1130 = vsub.f32 %v1122, %v1126
    %v1131 = vsub.f32 %v1123, %v1129
    %v1132 = vmul.f32 %v1130, 1.442695
    %v1133 = vpow.pop %v1132
    %v1134 = vmul.f32 %v1131, 1.442695
    %v1135 = vpow.pop %v1134
    %v1136 = vsel %vm270, %v1133, 0.0
    %1137 = vadd.xlane.f32.xlu0 %v1136
    %v1138 = vpop.xlane.xlu0 %1137
    %v1139 = vsel %vm270, %v1135, 0.0
    %1140 = vadd.xlane.f32.xlu0 %v1139
    %v1141 = vpop.xlane.xlu0 %1140
    %v1142 = vrcp.pop %v1138
    %v1143 = vrcp.pop %v1141
    %v1144 = vmul.f32 %v1133, %v1142
    %v1145 = vmul.f32 %v1135, %v1143
    %1146 = vrot.lane.b32.xlu0 %v255, 48
    %v1147 = vpop.permute.xlu0 %1146
    %v1150 = vsel %vm270, %v1144, 0
    %1152 = vmatprep.subr.mxu0 0.0
    %1153 = vmatpush1.msra.mxu0 %v1147
    %1154 = vmatprep.subr.mxu0 0.0
    %1155 = vmatpush1.msra.mxu0 0.0
    %1156 = vmatprep.subr.mxu0 0.0
    %1157 = vmatpush1.msra.mxu0 0.0
    %1158 = vmatprep.subr.mxu0 0.0
    %1159 = vmatpush1.msra.mxu0 0.0
    %1160 = vmatprep.subr.mxu0 0.0
    %1161 = vmatpush1.msra.mxu0 0.0
    %1162 = vmatprep.subr.mxu0 0.0
    %1163 = vmatpush1.msra.mxu0 0.0
    %1164 = vmatprep.subr.mxu0 0.0
    %1165 = vmatpush1.msra.mxu0 0.0
    %1166 = vmatprep.subr.mxu0 0.0
    %1167 = vmatpush1.msra.mxu0 0.0
    %1168 = vmatprep.subr.mxu0 0.0
    %1169 = vmatpush1.msra.mxu0 0.0
    %1170 = vmatprep.subr.mxu0 0.0
    %1171 = vmatpush1.msra.mxu0 0.0
    %1172 = vmatprep.subr.mxu0 0.0
    %1173 = vmatpush1.msra.mxu0 0.0
    %1174 = vmatprep.subr.mxu0 0.0
    %1175 = vmatpush1.msra.mxu0 0.0
    %1176 = vmatprep.subr.mxu0 0.0
    %1177 = vmatpush1.msra.mxu0 0.0
    %1178 = vmatprep.subr.mxu0 0.0
    %1179 = vmatpush1.msra.mxu0 0.0
    %1180 = vmatprep.subr.mxu0 0.0
    %1181 = vmatpush1.msra.mxu0 0.0
    %1182 = vmatprep.subr.mxu0 0.0
    %1183 = vmatpush1.msra.mxu0 0.0
    %1184 = vmatprep.subr.mxu0 0.0
    %1185 = vmatpush1.msra.mxu0 0.0
    %1186 = vmatprep.subr.mxu0 0.0
    %1187 = vmatpush1.msra.mxu0 0.0
    %1188 = vmatprep.subr.mxu0 0.0
    %1189 = vmatpush1.msra.mxu0 0.0
    %1190 = vmatprep.subr.mxu0 0.0
    %1191 = vmatpush1.msra.mxu0 0.0
    %1192 = vmatprep.subr.mxu0 0.0
    %1193 = vmatpush1.msra.mxu0 0.0
    %1194 = vmatprep.subr.mxu0 0.0
    %1195 = vmatpush1.msra.mxu0 0.0
    %1196 = vmatprep.subr.mxu0 0.0
    %1197 = vmatpush1.msra.mxu0 0.0
    %1198 = vmatprep.subr.mxu0 0.0
    %1199 = vmatpush1.msra.mxu0 0.0
    %1200 = vmatprep.subr.mxu0 0.0
    %1201 = vmatpush1.msra.mxu0 0.0
    %1202 = vmatprep.subr.mxu0 0.0
    %1203 = vmatpush1.msra.mxu0 0.0
    %1204 = vmatprep.subr.mxu0 0.0
    %1205 = vmatpush1.msra.mxu0 0.0
    %1206 = vmatprep.subr.mxu0 0.0
    %1207 = vmatpush1.msra.mxu0 0.0
    %1208 = vmatprep.subr.mxu0 0.0
    %1209 = vmatpush1.msra.mxu0 0.0
    %1210 = vmatprep.subr.mxu0 0.0
    %1211 = vmatpush1.msra.mxu0 0.0
    %1212 = vmatprep.subr.mxu0 0.0
    %1213 = vmatpush1.msra.mxu0 0.0
    %1214 = vmatprep.subr.mxu0 0.0
    %1215 = vmatpush1.msra.mxu0 0.0
    %1216 = vmatprep.mubr.f32.mxu0 0.0
    %1217 = vmatmul.mubr.f32.gmra.mrb[0].mxu0 %v1150
    %v1218 = vpop.f32.mrb[0].mxu0
    %v1219 = vadd.f32 0.0, %v1218
    %v1220 = vpop.f32.mrb[0].mxu0
    %1221 = vdwg.mxu0
    %1222 = vrot.lane.b32.xlu0 %v260, 48
    %v1223 = vpop.permute.xlu0 %1222
    %v1226 = vsel %vm270, %v1145, 0
    %1228 = vmatprep.subr.mxu0 0.0
    %1229 = vmatpush1.msra.mxu0 %v1223
    %1230 = vmatprep.subr.mxu0 0.0
    %1231 = vmatpush1.msra.mxu0 0.0
    %1232 = vmatprep.subr.mxu0 0.0
    %1233 = vmatpush1.msra.mxu0 0.0
    %1234 = vmatprep.subr.mxu0 0.0
    %1235 = vmatpush1.msra.mxu0 0.0
    %1236 = vmatprep.subr.mxu0 0.0
    %1237 = vmatpush1.msra.mxu0 0.0
    %1238 = vmatprep.subr.mxu0 0.0
    %1239 = vmatpush1.msra.mxu0 0.0
    %1240 = vmatprep.subr.mxu0 0.0
    %1241 = vmatpush1.msra.mxu0 0.0
    %1242 = vmatprep.subr.mxu0 0.0
    %1243 = vmatpush1.msra.mxu0 0.0
    %1244 = vmatprep.subr.mxu0 0.0
    %1245 = vmatpush1.msra.mxu0 0.0
    %1246 = vmatprep.subr.mxu0 0.0
    %1247 = vmatpush1.msra.mxu0 0.0
    %1248 = vmatprep.subr.mxu0 0.0
    %1249 = vmatpush1.msra.mxu0 0.0
    %1250 = vmatprep.subr.mxu0 0.0
    %1251 = vmatpush1.msra.mxu0 0.0
    %1252 = vmatprep.subr.mxu0 0.0
    %1253 = vmatpush1.msra.mxu0 0.0
    %1254 = vmatprep.subr.mxu0 0.0
    %1255 = vmatpush1.msra.mxu0 0.0
    %1256 = vmatprep.subr.mxu0 0.0
    %1257 = vmatpush1.msra.mxu0 0.0
    %1258 = vmatprep.subr.mxu0 0.0
    %1259 = vmatpush1.msra.mxu0 0.0
    %1260 = vmatprep.subr.mxu0 0.0
    %1261 = vmatpush1.msra.mxu0 0.0
    %1262 = vmatprep.subr.mxu0 0.0
    %1263 = vmatpush1.msra.mxu0 0.0
    %1264 = vmatprep.subr.mxu0 0.0
    %1265 = vmatpush1.msra.mxu0 0.0
    %1266 = vmatprep.subr.mxu0 0.0
    %1267 = vmatpush1.msra.mxu0 0.0
    %1268 = vmatprep.subr.mxu0 0.0
    %1269 = vmatpush1.msra.mxu0 0.0
    %1270 = vmatprep.subr.mxu0 0.0
    %1271 = vmatpush1.msra.mxu0 0.0
    %1272 = vmatprep.subr.mxu0 0.0
    %1273 = vmatpush1.msra.mxu0 0.0
    %1274 = vmatprep.subr.mxu0 0.0
    %1275 = vmatpush1.msra.mxu0 0.0
    %1276 = vmatprep.subr.mxu0 0.0
    %1277 = vmatpush1.msra.mxu0 0.0
    %1278 = vmatprep.subr.mxu0 0.0
    %1279 = vmatpush1.msra.mxu0 0.0
    %1280 = vmatprep.subr.mxu0 0.0
    %1281 = vmatpush1.msra.mxu0 0.0
    %1282 = vmatprep.subr.mxu0 0.0
    %1283 = vmatpush1.msra.mxu0 0.0
    %1284 = vmatprep.subr.mxu0 0.0
    %1285 = vmatpush1.msra.mxu0 0.0
    %1286 = vmatprep.subr.mxu0 0.0
    %1287 = vmatpush1.msra.mxu0 0.0
    %1288 = vmatprep.subr.mxu0 0.0
    %1289 = vmatpush1.msra.mxu0 0.0
    %1290 = vmatprep.subr.mxu0 0.0
    %1291 = vmatpush1.msra.mxu0 0.0
    %1292 = vmatprep.mubr.f32.mxu0 0.0
    %1293 = vmatmul.mubr.f32.gmra.mrb[0].mxu0 %v1226
    %v1294 = vpop.f32.mrb[0].mxu0
    %v1295 = vadd.f32 0.0, %v1294
    %v1296 = vpop.f32.mrb[0].mxu0
    %1297 = vdwg.mxu0
    %v1298 = vand.u32 2147483647, %v1219
    %v1299 = vand.u32 2147483647, %v1295
    %v1300 = vsel %vm270, %v1298, -inf
    %v1301 = vsel %vm270, %v1299, -inf
    %v1302 = vmax.f32 %v1300, %v1301
    %1303 = vmax.xlane.f32.xlu0 %v1302
    %v1304 = vpop.xlane.xlu0 %1303
    %v1305 = vrot.slane %v1304, 4
    %v1306 = vmax.f32 %v1304, %v1305
    %v1307 = vrot.slane %v1306, 2
    %v1308 = vmax.f32 %v1306, %v1307
    %v1309 = vrot.slane %v1308, 1
    %v1310 = vmax.f32 %v1308, %v1309
    %s1311 = vtos %v1310
    %s1312 = smax.f32 %s963, %s1311
    %1313 = vrot.lane.b32.xlu0 %v255, 104
    %v1314 = vpop.permute.xlu0 %1313
    %1315 = vrot.lane.b32.xlu0 %v255, 72
    %v1316 = vpop.permute.xlu0 %1315
    %v1317 = vsel %vm270, %v1314, 0
    %v1319 = vsel %vm270, %v1316, 0
    %1321 = vmatprep.subr.mxu0 0.0
    %1322 = vmatpush1.xpose.msra.mxu0 %v1319
    %1323 = vmatprep.subr.mxu0 0.0
    %1324 = vmatpush1.xpose.msra.mxu0 0.0
    %1325 = vmatprep.subr.mxu0 0.0
    %1326 = vmatpush1.xpose.msra.mxu0 0.0
    %1327 = vmatprep.subr.mxu0 0.0
    %1328 = vmatpush1.xpose.msra.mxu0 0.0
    %1329 = vmatprep.subr.mxu0 0.0
    %1330 = vmatpush1.xpose.msra.mxu0 0.0
    %1331 = vmatprep.subr.mxu0 0.0
    %1332 = vmatpush1.xpose.msra.mxu0 0.0
    %1333 = vmatprep.subr.mxu0 0.0
    %1334 = vmatpush1.xpose.msra.mxu0 0.0
    %1335 = vmatprep.subr.mxu0 0.0
    %1336 = vmatpush1.xpose.msra.mxu0 0.0
    %1337 = vmatprep.subr.mxu0 0.0
    %1338 = vmatpush1.xpose.msra.mxu0 0.0
    %1339 = vmatprep.subr.mxu0 0.0
    %1340 = vmatpush1.xpose.msra.mxu0 0.0
    %1341 = vmatprep.subr.mxu0 0.0
    %1342 = vmatpush1.xpose.msra.mxu0 0.0
    %1343 = vmatprep.subr.mxu0 0.0
    %1344 = vmatpush1.xpose.msra.mxu0 0.0
    %1345 = vmatprep.subr.mxu0 0.0
    %1346 = vmatpush1.xpose.msra.mxu0 0.0
    %1347 = vmatprep.subr.mxu0 0.0
    %1348 = vmatpush1.xpose.msra.mxu0 0.0
    %1349 = vmatprep.subr.mxu0 0.0
    %1350 = vmatpush1.xpose.msra.mxu0 0.0
    %1351 = vmatprep.subr.mxu0 0.0
    %1352 = vmatpush1.xpose.msra.mxu0 0.0
    %1353 = vmatprep.subr.mxu0 0.0
    %1354 = vmatpush1.xpose.msra.mxu0 0.0
    %1355 = vmatprep.subr.mxu0 0.0
    %1356 = vmatpush1.xpose.msra.mxu0 0.0
    %1357 = vmatprep.subr.mxu0 0.0
    %1358 = vmatpush1.xpose.msra.mxu0 0.0
    %1359 = vmatprep.subr.mxu0 0.0
    %1360 = vmatpush1.xpose.msra.mxu0 0.0
    %1361 = vmatprep.subr.mxu0 0.0
    %1362 = vmatpush1.xpose.msra.mxu0 0.0
    %1363 = vmatprep.subr.mxu0 0.0
    %1364 = vmatpush1.xpose.msra.mxu0 0.0
    %1365 = vmatprep.subr.mxu0 0.0
    %1366 = vmatpush1.xpose.msra.mxu0 0.0
    %1367 = vmatprep.subr.mxu0 0.0
    %1368 = vmatpush1.xpose.msra.mxu0 0.0
    %1369 = vmatprep.subr.mxu0 0.0
    %1370 = vmatpush1.xpose.msra.mxu0 0.0
    %1371 = vmatprep.subr.mxu0 0.0
    %1372 = vmatpush1.xpose.msra.mxu0 0.0
    %1373 = vmatprep.subr.mxu0 0.0
    %1374 = vmatpush1.xpose.msra.mxu0 0.0
    %1375 = vmatprep.subr.mxu0 0.0
    %1376 = vmatpush1.xpose.msra.mxu0 0.0
    %1377 = vmatprep.subr.mxu0 0.0
    %1378 = vmatpush1.xpose.msra.mxu0 0.0
    %1379 = vmatprep.subr.mxu0 0.0
    %1380 = vmatpush1.xpose.msra.mxu0 0.0
    %1381 = vmatprep.subr.mxu0 0.0
    %1382 = vmatpush1.xpose.msra.mxu0 0.0
    %1383 = vmatprep.subr.mxu0 0.0
    %1384 = vmatpush1.xpose.msra.mxu0 0.0
    %1385 = vmatprep.mubr.f32.mxu0 0.0
    %1386 = vmatmul.mubr.f32.gmra.mrb[0].mxu0 %v1317
    %v1387 = vpop.f32.mrb[0].mxu0
    %v1388 = vadd.f32 0.0, %v1387
    %v1389 = vpop.f32.mrb[0].mxu0
    %1390 = vdwg.mxu0
    %1391 = vrot.lane.b32.xlu0 %v260, 104
    %v1392 = vpop.permute.xlu0 %1391
    %1393 = vrot.lane.b32.xlu0 %v260, 72
    %v1394 = vpop.permute.xlu0 %1393
    %v1395 = vsel %vm270, %v1392, 0
    %v1397 = vsel %vm270, %v1394, 0
    %1399 = vmatprep.subr.mxu0 0.0
    %1400 = vmatpush1.xpose.msra.mxu0 %v1397
    %1401 = vmatprep.subr.mxu0 0.0
    %1402 = vmatpush1.xpose.msra.mxu0 0.0
    %1403 = vmatprep.subr.mxu0 0.0
    %1404 = vmatpush1.xpose.msra.mxu0 0.0
    %1405 = vmatprep.subr.mxu0 0.0
    %1406 = vmatpush1.xpose.msra.mxu0 0.0
    %1407 = vmatprep.subr.mxu0 0.0
    %1408 = vmatpush1.xpose.msra.mxu0 0.0
    %1409 = vmatprep.subr.mxu0 0.0
    %1410 = vmatpush1.xpose.msra.mxu0 0.0
    %1411 = vmatprep.subr.mxu0 0.0
    %1412 = vmatpush1.xpose.msra.mxu0 0.0
    %1413 = vmatprep.subr.mxu0 0.0
    %1414 = vmatpush1.xpose.msra.mxu0 0.0
    %1415 = vmatprep.subr.mxu0 0.0
    %1416 = vmatpush1.xpose.msra.mxu0 0.0
    %1417 = vmatprep.subr.mxu0 0.0
    %1418 = vmatpush1.xpose.msra.mxu0 0.0
    %1419 = vmatprep.subr.mxu0 0.0
    %1420 = vmatpush1.xpose.msra.mxu0 0.0
    %1421 = vmatprep.subr.mxu0 0.0
    %1422 = vmatpush1.xpose.msra.mxu0 0.0
    %1423 = vmatprep.subr.mxu0 0.0
    %1424 = vmatpush1.xpose.msra.mxu0 0.0
    %1425 = vmatprep.subr.mxu0 0.0
    %1426 = vmatpush1.xpose.msra.mxu0 0.0
    %1427 = vmatprep.subr.mxu0 0.0
    %1428 = vmatpush1.xpose.msra.mxu0 0.0
    %1429 = vmatprep.subr.mxu0 0.0
    %1430 = vmatpush1.xpose.msra.mxu0 0.0
    %1431 = vmatprep.subr.mxu0 0.0
    %1432 = vmatpush1.xpose.msra.mxu0 0.0
    %1433 = vmatprep.subr.mxu0 0.0
    %1434 = vmatpush1.xpose.msra.mxu0 0.0
    %1435 = vmatprep.subr.mxu0 0.0
    %1436 = vmatpush1.xpose.msra.mxu0 0.0
    %1437 = vmatprep.subr.mxu0 0.0
    %1438 = vmatpush1.xpose.msra.mxu0 0.0
    %1439 = vmatprep.subr.mxu0 0.0
    %1440 = vmatpush1.xpose.msra.mxu0 0.0
    %1441 = vmatprep.subr.mxu0 0.0
    %1442 = vmatpush1.xpose.msra.mxu0 0.0
    %1443 = vmatprep.subr.mxu0 0.0
    %1444 = vmatpush1.xpose.msra.mxu0 0.0
    %1445 = vmatprep.subr.mxu0 0.0
    %1446 = vmatpush1.xpose.msra.mxu0 0.0
    %1447 = vmatprep.subr.mxu0 0.0
    %1448 = vmatpush1.xpose.msra.mxu0 0.0
    %1449 = vmatprep.subr.mxu0 0.0
    %1450 = vmatpush1.xpose.msra.mxu0 0.0
    %1451 = vmatprep.subr.mxu0 0.0
    %1452 = vmatpush1.xpose.msra.mxu0 0.0
    %1453 = vmatprep.subr.mxu0 0.0
    %1454 = vmatpush1.xpose.msra.mxu0 0.0
    %1455 = vmatprep.subr.mxu0 0.0
    %1456 = vmatpush1.xpose.msra.mxu0 0.0
    %1457 = vmatprep.subr.mxu0 0.0
    %1458 = vmatpush1.xpose.msra.mxu0 0.0
    %1459 = vmatprep.subr.mxu0 0.0
    %1460 = vmatpush1.xpose.msra.mxu0 0.0
    %1461 = vmatprep.subr.mxu0 0.0
    %1462 = vmatpush1.xpose.msra.mxu0 0.0
    %1463 = vmatprep.mubr.f32.mxu0 0.0
    %1464 = vmatmul.mubr.f32.gmra.mrb[0].mxu0 %v1395
    %v1465 = vpop.f32.mrb[0].mxu0
    %v1466 = vadd.f32 0.0, %v1465
    %v1467 = vpop.f32.mrb[0].mxu0
    %1468 = vdwg.mxu0
    %v1469 = vmul.f32 %v1388, 0.35355338
    %v1470 = vmul.f32 %v1466, 0.35355338
    %v1471 = vadd.f32 %v1469, %v78
    %v1472 = vadd.f32 %v1470, %v79
    %v1473 = vsel %vm270, %v1471, -inf
    %1474 = vmax.xlane.f32.xlu0 %v1473
    %v1475 = vpop.xlane.xlu0 %1474
    %v1476 = vsel %vm270, %v1472, -inf
    %1477 = vmax.xlane.f32.xlu0 %v1476
    %v1478 = vpop.xlane.xlu0 %1477
    %v1479 = vsub.f32 %v1471, %v1475
    %v1480 = vsub.f32 %v1472, %v1478
    %v1481 = vmul.f32 %v1479, 1.442695
    %v1482 = vpow.pop %v1481
    %v1483 = vmul.f32 %v1480, 1.442695
    %v1484 = vpow.pop %v1483
    %v1485 = vsel %vm270, %v1482, 0.0
    %1486 = vadd.xlane.f32.xlu0 %v1485
    %v1487 = vpop.xlane.xlu0 %1486
    %v1488 = vsel %vm270, %v1484, 0.0
    %1489 = vadd.xlane.f32.xlu0 %v1488
    %v1490 = vpop.xlane.xlu0 %1489
    %v1491 = vrcp.pop %v1487
    %v1492 = vrcp.pop %v1490
    %v1493 = vmul.f32 %v1482, %v1491
    %v1494 = vmul.f32 %v1484, %v1492
    %1495 = vrot.lane.b32.xlu0 %v255, 40
    %v1496 = vpop.permute.xlu0 %1495
    %v1499 = vsel %vm270, %v1493, 0
    %1501 = vmatprep.subr.mxu0 0.0
    %1502 = vmatpush1.msra.mxu0 %v1496
    %1503 = vmatprep.subr.mxu0 0.0
    %1504 = vmatpush1.msra.mxu0 0.0
    %1505 = vmatprep.subr.mxu0 0.0
    %1506 = vmatpush1.msra.mxu0 0.0
    %1507 = vmatprep.subr.mxu0 0.0
    %1508 = vmatpush1.msra.mxu0 0.0
    %1509 = vmatprep.subr.mxu0 0.0
    %1510 = vmatpush1.msra.mxu0 0.0
    %1511 = vmatprep.subr.mxu0 0.0
    %1512 = vmatpush1.msra.mxu0 0.0
    %1513 = vmatprep.subr.mxu0 0.0
    %1514 = vmatpush1.msra.mxu0 0.0
    %1515 = vmatprep.subr.mxu0 0.0
    %1516 = vmatpush1.msra.mxu0 0.0
    %1517 = vmatprep.subr.mxu0 0.0
    %1518 = vmatpush1.msra.mxu0 0.0
    %1519 = vmatprep.subr.mxu0 0.0
    %1520 = vmatpush1.msra.mxu0 0.0
    %1521 = vmatprep.subr.mxu0 0.0
    %1522 = vmatpush1.msra.mxu0 0.0
    %1523 = vmatprep.subr.mxu0 0.0
    %1524 = vmatpush1.msra.mxu0 0.0
    %1525 = vmatprep.subr.mxu0 0.0
    %1526 = vmatpush1.msra.mxu0 0.0
    %1527 = vmatprep.subr.mxu0 0.0
    %1528 = vmatpush1.msra.mxu0 0.0
    %1529 = vmatprep.subr.mxu0 0.0
    %1530 = vmatpush1.msra.mxu0 0.0
    %1531 = vmatprep.subr.mxu0 0.0
    %1532 = vmatpush1.msra.mxu0 0.0
    %1533 = vmatprep.subr.mxu0 0.0
    %1534 = vmatpush1.msra.mxu0 0.0
    %1535 = vmatprep.subr.mxu0 0.0
    %1536 = vmatpush1.msra.mxu0 0.0
    %1537 = vmatprep.subr.mxu0 0.0
    %1538 = vmatpush1.msra.mxu0 0.0
    %1539 = vmatprep.subr.mxu0 0.0
    %1540 = vmatpush1.msra.mxu0 0.0
    %1541 = vmatprep.subr.mxu0 0.0
    %1542 = vmatpush1.msra.mxu0 0.0
    %1543 = vmatprep.subr.mxu0 0.0
    %1544 = vmatpush1.msra.mxu0 0.0
    %1545 = vmatprep.subr.mxu0 0.0
    %1546 = vmatpush1.msra.mxu0 0.0
    %1547 = vmatprep.subr.mxu0 0.0
    %1548 = vmatpush1.msra.mxu0 0.0
    %1549 = vmatprep.subr.mxu0 0.0
    %1550 = vmatpush1.msra.mxu0 0.0
    %1551 = vmatprep.subr.mxu0 0.0
    %1552 = vmatpush1.msra.mxu0 0.0
    %1553 = vmatprep.subr.mxu0 0.0
    %1554 = vmatpush1.msra.mxu0 0.0
    %1555 = vmatprep.subr.mxu0 0.0
    %1556 = vmatpush1.msra.mxu0 0.0
    %1557 = vmatprep.subr.mxu0 0.0
    %1558 = vmatpush1.msra.mxu0 0.0
    %1559 = vmatprep.subr.mxu0 0.0
    %1560 = vmatpush1.msra.mxu0 0.0
    %1561 = vmatprep.subr.mxu0 0.0
    %1562 = vmatpush1.msra.mxu0 0.0
    %1563 = vmatprep.subr.mxu0 0.0
    %1564 = vmatpush1.msra.mxu0 0.0
    %1565 = vmatprep.mubr.f32.mxu0 0.0
    %1566 = vmatmul.mubr.f32.gmra.mrb[0].mxu0 %v1499
    %v1567 = vpop.f32.mrb[0].mxu0
    %v1568 = vadd.f32 0.0, %v1567
    %v1569 = vpop.f32.mrb[0].mxu0
    %1570 = vdwg.mxu0
    %1571 = vrot.lane.b32.xlu0 %v260, 40
    %v1572 = vpop.permute.xlu0 %1571
    %v1575 = vsel %vm270, %v1494, 0
    %1577 = vmatprep.subr.mxu0 0.0
    %1578 = vmatpush1.msra.mxu0 %v1572
    %1579 = vmatprep.subr.mxu0 0.0
    %1580 = vmatpush1.msra.mxu0 0.0
    %1581 = vmatprep.subr.mxu0 0.0
    %1582 = vmatpush1.msra.mxu0 0.0
    %1583 = vmatprep.subr.mxu0 0.0
    %1584 = vmatpush1.msra.mxu0 0.0
    %1585 = vmatprep.subr.mxu0 0.0
    %1586 = vmatpush1.msra.mxu0 0.0
    %1587 = vmatprep.subr.mxu0 0.0
    %1588 = vmatpush1.msra.mxu0 0.0
    %1589 = vmatprep.subr.mxu0 0.0
    %1590 = vmatpush1.msra.mxu0 0.0
    %1591 = vmatprep.subr.mxu0 0.0
    %1592 = vmatpush1.msra.mxu0 0.0
    %1593 = vmatprep.subr.mxu0 0.0
    %1594 = vmatpush1.msra.mxu0 0.0
    %1595 = vmatprep.subr.mxu0 0.0
    %1596 = vmatpush1.msra.mxu0 0.0
    %1597 = vmatprep.subr.mxu0 0.0
    %1598 = vmatpush1.msra.mxu0 0.0
    %1599 = vmatprep.subr.mxu0 0.0
    %1600 = vmatpush1.msra.mxu0 0.0
    %1601 = vmatprep.subr.mxu0 0.0
    %1602 = vmatpush1.msra.mxu0 0.0
    %1603 = vmatprep.subr.mxu0 0.0
    %1604 = vmatpush1.msra.mxu0 0.0
    %1605 = vmatprep.subr.mxu0 0.0
    %1606 = vmatpush1.msra.mxu0 0.0
    %1607 = vmatprep.subr.mxu0 0.0
    %1608 = vmatpush1.msra.mxu0 0.0
    %1609 = vmatprep.subr.mxu0 0.0
    %1610 = vmatpush1.msra.mxu0 0.0
    %1611 = vmatprep.subr.mxu0 0.0
    %1612 = vmatpush1.msra.mxu0 0.0
    %1613 = vmatprep.subr.mxu0 0.0
    %1614 = vmatpush1.msra.mxu0 0.0
    %1615 = vmatprep.subr.mxu0 0.0
    %1616 = vmatpush1.msra.mxu0 0.0
    %1617 = vmatprep.subr.mxu0 0.0
    %1618 = vmatpush1.msra.mxu0 0.0
    %1619 = vmatprep.subr.mxu0 0.0
    %1620 = vmatpush1.msra.mxu0 0.0
    %1621 = vmatprep.subr.mxu0 0.0
    %1622 = vmatpush1.msra.mxu0 0.0
    %1623 = vmatprep.subr.mxu0 0.0
    %1624 = vmatpush1.msra.mxu0 0.0
    %1625 = vmatprep.subr.mxu0 0.0
    %1626 = vmatpush1.msra.mxu0 0.0
    %1627 = vmatprep.subr.mxu0 0.0
    %1628 = vmatpush1.msra.mxu0 0.0
    %1629 = vmatprep.subr.mxu0 0.0
    %1630 = vmatpush1.msra.mxu0 0.0
    %1631 = vmatprep.subr.mxu0 0.0
    %1632 = vmatpush1.msra.mxu0 0.0
    %1633 = vmatprep.subr.mxu0 0.0
    %1634 = vmatpush1.msra.mxu0 0.0
    %1635 = vmatprep.subr.mxu0 0.0
    %1636 = vmatpush1.msra.mxu0 0.0
    %1637 = vmatprep.subr.mxu0 0.0
    %1638 = vmatpush1.msra.mxu0 0.0
    %1639 = vmatprep.subr.mxu0 0.0
    %1640 = vmatpush1.msra.mxu0 0.0
    %1641 = vmatprep.mubr.f32.mxu0 0.0
    %1642 = vmatmul.mubr.f32.gmra.mrb[0].mxu0 %v1575
    %v1643 = vpop.f32.mrb[0].mxu0
    %v1644 = vadd.f32 0.0, %v1643
    %v1645 = vpop.f32.mrb[0].mxu0
    %1646 = vdwg.mxu0
    %v1647 = vand.u32 2147483647, %v1568
    %v1648 = vand.u32 2147483647, %v1644
    %v1649 = vsel %vm270, %v1647, -inf
    %v1650 = vsel %vm270, %v1648, -inf
    %v1651 = vmax.f32 %v1649, %v1650
    %1652 = vmax.xlane.f32.xlu0 %v1651
    %v1653 = vpop.xlane.xlu0 %1652
    %v1654 = vrot.slane %v1653, 4
    %v1655 = vmax.f32 %v1653, %v1654
    %v1656 = vrot.slane %v1655, 2
    %v1657 = vmax.f32 %v1655, %v1656
    %v1658 = vrot.slane %v1657, 1
    %v1659 = vmax.f32 %v1657, %v1658
    %s1660 = vtos %v1659
    %s1661 = smax.f32 %s1312, %s1660
    %s1662 = smul.f32 %s1661, 2.0
    %v1663 = vrcp.pop 511.0
    %s1664 = vtos %v1663
    %s1665 = smul.f32 %s1662, %s1664
    %p1666 = scmp.eq.f32.partialorder %s1665, 0.0
    %s1667 = scalar_select %p1666, 1e-05, %s1665
    %v1668 = vstv %s1667
    %v1669 = vrcp.pop %v1668
    %v1670 = vmul.f32 %v521, %v1669
    %v1671 = vmul.f32 %v597, %v1669
    %v1672 = vround.ne.pseudo %v1670
    %v1673 = vround.ne.pseudo %v1671
    %v1674 = vmax.f32 %v1672, -256.0
    %v1675 = vmax.f32 %v1673, -256.0
    %v1676 = vmin.f32 %v1674, 255.0
    %v1677 = vmin.f32 %v1675, 255.0
    %v1678 = vmul.f32 %v1676, %v1668
    %v1679 = vmul.f32 %v1677, %v1668
    %v1680 = vmul.f32 %v870, %v1669
    %v1681 = vmul.f32 %v946, %v1669
    %v1682 = vround.ne.pseudo %v1680
    %v1683 = vround.ne.pseudo %v1681
    %v1684 = vmax.f32 %v1682, -256.0
    %v1685 = vmax.f32 %v1683, -256.0
    %v1686 = vmin.f32 %v1684, 255.0
    %v1687 = vmin.f32 %v1685, 255.0
    %v1688 = vmul.f32 %v1686, %v1668
    %v1689 = vmul.f32 %v1687, %v1668
    %v1691 = vsel %vm270, %v1688, 0
    %v1694 = vsel %vm270, %v1689, 0
    %1696 = vmatprep.subr.mxu0 0.0
    %1697 = vmatpush1.msra.mxu0 %v264
    %1698 = vmatprep.subr.mxu0 0.0
    %1699 = vmatpush1.msra.mxu0 0.0
    %1700 = vmatprep.subr.mxu0 0.0
    %1701 = vmatpush1.msra.mxu0 0.0
    %1702 = vmatprep.subr.mxu0 0.0
    %1703 = vmatpush1.msra.mxu0 0.0
    %1704 = vmatprep.subr.mxu0 0.0
    %1705 = vmatpush1.msra.mxu0 0.0
    %1706 = vmatprep.subr.mxu0 0.0
    %1707 = vmatpush1.msra.mxu0 0.0
    %1708 = vmatprep.subr.mxu0 0.0
    %1709 = vmatpush1.msra.mxu0 0.0
    %1710 = vmatprep.subr.mxu0 0.0
    %1711 = vmatpush1.msra.mxu0 0.0
    %1712 = vmatprep.subr.mxu0 0.0
    %1713 = vmatpush1.msra.mxu0 0.0
    %1714 = vmatprep.subr.mxu0 0.0
    %1715 = vmatpush1.msra.mxu0 0.0
    %1716 = vmatprep.subr.mxu0 0.0
    %1717 = vmatpush1.msra.mxu0 0.0
    %1718 = vmatprep.subr.mxu0 0.0
    %1719 = vmatpush1.msra.mxu0 0.0
    %1720 = vmatprep.subr.mxu0 0.0
    %1721 = vmatpush1.msra.mxu0 0.0
    %1722 = vmatprep.subr.mxu0 0.0
    %1723 = vmatpush1.msra.mxu0 0.0
    %1724 = vmatprep.subr.mxu0 0.0
    %1725 = vmatpush1.msra.mxu0 0.0
    %1726 = vmatprep.subr.mxu0 0.0
    %1727 = vmatpush1.msra.mxu0 0.0
    %1728 = vmatprep.subr.mxu0 0.0
    %1729 = vmatpush1.msra.mxu0 0.0
    %1730 = vmatprep.subr.mxu0 0.0
    %1731 = vmatpush1.msra.mxu0 0.0
    %1732 = vmatprep.subr.mxu0 0.0
    %1733 = vmatpush1.msra.mxu0 0.0
    %1734 = vmatprep.subr.mxu0 0.0
    %1735 = vmatpush1.msra.mxu0 0.0
    %1736 = vmatprep.subr.mxu0 0.0
    %1737 = vmatpush1.msra.mxu0 0.0
    %1738 = vmatprep.subr.mxu0 0.0
    %1739 = vmatpush1.msra.mxu0 0.0
    %1740 = vmatprep.subr.mxu0 0.0
    %1741 = vmatpush1.msra.mxu0 0.0
    %1742 = vmatprep.subr.mxu0 0.0
    %1743 = vmatpush1.msra.mxu0 0.0
    %1744 = vmatprep.subr.mxu0 0.0
    %1745 = vmatpush1.msra.mxu0 0.0
    %1746 = vmatprep.subr.mxu0 0.0
    %1747 = vmatpush1.msra.mxu0 0.0
    %1748 = vmatprep.subr.mxu0 0.0
    %1749 = vmatpush1.msra.mxu0 0.0
    %1750 = vmatprep.subr.mxu0 0.0
    %1751 = vmatpush1.msra.mxu0 0.0
    %1752 = vmatprep.subr.mxu0 0.0
    %1753 = vmatpush1.msra.mxu0 0.0
    %1754 = vmatprep.subr.mxu0 0.0
    %1755 = vmatpush1.msra.mxu0 0.0
    %1756 = vmatprep.subr.mxu0 0.0
    %1757 = vmatpush1.msra.mxu0 0.0
    %1758 = vmatprep.subr.mxu0 0.0
    %1759 = vmatpush1.msra.mxu0 0.0
    %1760 = vmatprep.mubr.f32.mxu0 0.0
    %1761 = vmatmul.mubr.f32.gmra.mrb[0].mxu0 %v1691
    %v1762 = vpop.f32.mrb[0].mxu0
    %v1763 = vadd.f32 0.0, %v1762
    %v1764 = vpop.f32.mrb[0].mxu0
    %1765 = vmatprep.mubr.f32.mxu0 0.0
    %1766 = vmatmul.mubr.f32.gmra.mrb[0].mxu0 %v1694
    %v1767 = vpop.f32.mrb[0].mxu0
    %v1768 = vadd.f32 0.0, %v1767
    %v1769 = vpop.f32.mrb[0].mxu0
    %1770 = vdwg.mxu0
    %v1772 = vsel %vm270, %v1678, 0
    %v1775 = vsel %vm270, %v1679, 0
    %1777 = vmatprep.subr.mxu0 0.0
    %1778 = vmatpush1.msra.mxu0 %v263
    %1779 = vmatprep.subr.mxu0 0.0
    %1780 = vmatpush1.msra.mxu0 0.0
    %1781 = vmatprep.subr.mxu0 0.0
    %1782 = vmatpush1.msra.mxu0 0.0
    %1783 = vmatprep.subr.mxu0 0.0
    %1784 = vmatpush1.msra.mxu0 0.0
    %1785 = vmatprep.subr.mxu0 0.0
    %1786 = vmatpush1.msra.mxu0 0.0
    %1787 = vmatprep.subr.mxu0 0.0
    %1788 = vmatpush1.msra.mxu0 0.0
    %1789 = vmatprep.subr.mxu0 0.0
    %1790 = vmatpush1.msra.mxu0 0.0
    %1791 = vmatprep.subr.mxu0 0.0
    %1792 = vmatpush1.msra.mxu0 0.0
    %1793 = vmatprep.subr.mxu0 0.0
    %1794 = vmatpush1.msra.mxu0 0.0
    %1795 = vmatprep.subr.mxu0 0.0
    %1796 = vmatpush1.msra.mxu0 0.0
    %1797 = vmatprep.subr.mxu0 0.0
    %1798 = vmatpush1.msra.mxu0 0.0
    %1799 = vmatprep.subr.mxu0 0.0
    %1800 = vmatpush1.msra.mxu0 0.0
    %1801 = vmatprep.subr.mxu0 0.0
    %1802 = vmatpush1.msra.mxu0 0.0
    %1803 = vmatprep.subr.mxu0 0.0
    %1804 = vmatpush1.msra.mxu0 0.0
    %1805 = vmatprep.subr.mxu0 0.0
    %1806 = vmatpush1.msra.mxu0 0.0
    %1807 = vmatprep.subr.mxu0 0.0
    %1808 = vmatpush1.msra.mxu0 0.0
    %1809 = vmatprep.subr.mxu0 0.0
    %1810 = vmatpush1.msra.mxu0 0.0
    %1811 = vmatprep.subr.mxu0 0.0
    %1812 = vmatpush1.msra.mxu0 0.0
    %1813 = vmatprep.subr.mxu0 0.0
    %1814 = vmatpush1.msra.mxu0 0.0
    %1815 = vmatprep.subr.mxu0 0.0
    %1816 = vmatpush1.msra.mxu0 0.0
    %1817 = vmatprep.subr.mxu0 0.0
    %1818 = vmatpush1.msra.mxu0 0.0
    %1819 = vmatprep.subr.mxu0 0.0
    %1820 = vmatpush1.msra.mxu0 0.0
    %1821 = vmatprep.subr.mxu0 0.0
    %1822 = vmatpush1.msra.mxu0 0.0
    %1823 = vmatprep.subr.mxu0 0.0
    %1824 = vmatpush1.msra.mxu0 0.0
    %1825 = vmatprep.subr.mxu0 0.0
    %1826 = vmatpush1.msra.mxu0 0.0
    %1827 = vmatprep.subr.mxu0 0.0
    %1828 = vmatpush1.msra.mxu0 0.0
    %1829 = vmatprep.subr.mxu0 0.0
    %1830 = vmatpush1.msra.mxu0 0.0
    %1831 = vmatprep.subr.mxu0 0.0
    %1832 = vmatpush1.msra.mxu0 0.0
    %1833 = vmatprep.subr.mxu0 0.0
    %1834 = vmatpush1.msra.mxu0 0.0
    %1835 = vmatprep.subr.mxu0 0.0
    %1836 = vmatpush1.msra.mxu0 0.0
    %1837 = vmatprep.subr.mxu0 0.0
    %1838 = vmatpush1.msra.mxu0 0.0
    %1839 = vmatprep.subr.mxu0 0.0
    %1840 = vmatpush1.msra.mxu0 0.0
    %1841 = vmatprep.mubr.f32.mxu0 0.0
    %1842 = vmatmul.mubr.f32.gmra.mrb[0].mxu0 %v1772
    %v1843 = vpop.f32.mrb[0].mxu0
    %v1844 = vadd.f32 %v1763, %v1843
    %v1845 = vpop.f32.mrb[0].mxu0
    %1846 = vmatprep.mubr.f32.mxu0 0.0
    %1847 = vmatmul.mubr.f32.gmra.mrb[0].mxu0 %v1775
    %v1848 = vpop.f32.mrb[0].mxu0
    %v1849 = vadd.f32 %v1768, %v1848
    %v1850 = vpop.f32.mrb[0].mxu0
    %1851 = vdwg.mxu0
    %v1852 = vmul.f32 %v1219, %v1669
    %v1853 = vmul.f32 %v1295, %v1669
    %v1854 = vround.ne.pseudo %v1852
    %v1855 = vround.ne.pseudo %v1853
    %v1856 = vmax.f32 %v1854, -256.0
    %v1857 = vmax.f32 %v1855, -256.0
    %v1858 = vmin.f32 %v1856, 255.0
    %v1859 = vmin.f32 %v1857, 255.0
    %v1860 = vmul.f32 %v1858, %v1668
    %v1861 = vmul.f32 %v1859, %v1668
    %v1863 = vsel %vm270, %v1860, 0
    %v1866 = vsel %vm270, %v1861, 0
    %1868 = vmatprep.subr.mxu0 0.0
    %1869 = vmatpush1.msra.mxu0 %v265
    %1870 = vmatprep.subr.mxu0 0.0
    %1871 = vmatpush1.msra.mxu0 0.0
    %1872 = vmatprep.subr.mxu0 0.0
    %1873 = vmatpush1.msra.mxu0 0.0
    %1874 = vmatprep.subr.mxu0 0.0
    %1875 = vmatpush1.msra.mxu0 0.0
    %1876 = vmatprep.subr.mxu0 0.0
    %1877 = vmatpush1.msra.mxu0 0.0
    %1878 = vmatprep.subr.mxu0 0.0
    %1879 = vmatpush1.msra.mxu0 0.0
    %1880 = vmatprep.subr.mxu0 0.0
    %1881 = vmatpush1.msra.mxu0 0.0
    %1882 = vmatprep.subr.mxu0 0.0
    %1883 = vmatpush1.msra.mxu0 0.0
    %1884 = vmatprep.subr.mxu0 0.0
    %1885 = vmatpush1.msra.mxu0 0.0
    %1886 = vmatprep.subr.mxu0 0.0
    %1887 = vmatpush1.msra.mxu0 0.0
    %1888 = vmatprep.subr.mxu0 0.0
    %1889 = vmatpush1.msra.mxu0 0.0
    %1890 = vmatprep.subr.mxu0 0.0
    %1891 = vmatpush1.msra.mxu0 0.0
    %1892 = vmatprep.subr.mxu0 0.0
    %1893 = vmatpush1.msra.mxu0 0.0
    %1894 = vmatprep.subr.mxu0 0.0
    %1895 = vmatpush1.msra.mxu0 0.0
    %1896 = vmatprep.subr.mxu0 0.0
    %1897 = vmatpush1.msra.mxu0 0.0
    %1898 = vmatprep.subr.mxu0 0.0
    %1899 = vmatpush1.msra.mxu0 0.0
    %1900 = vmatprep.subr.mxu0 0.0
    %1901 = vmatpush1.msra.mxu0 0.0
    %1902 = vmatprep.subr.mxu0 0.0
    %1903 = vmatpush1.msra.mxu0 0.0
    %1904 = vmatprep.subr.mxu0 0.0
    %1905 = vmatpush1.msra.mxu0 0.0
    %1906 = vmatprep.subr.mxu0 0.0
    %1907 = vmatpush1.msra.mxu0 0.0
    %1908 = vmatprep.subr.mxu0 0.0
    %1909 = vmatpush1.msra.mxu0 0.0
    %1910 = vmatprep.subr.mxu0 0.0
    %1911 = vmatpush1.msra.mxu0 0.0
    %1912 = vmatprep.subr.mxu0 0.0
    %1913 = vmatpush1.msra.mxu0 0.0
    %1914 = vmatprep.subr.mxu0 0.0
    %1915 = vmatpush1.msra.mxu0 0.0
    %1916 = vmatprep.subr.mxu0 0.0
    %1917 = vmatpush1.msra.mxu0 0.0
    %1918 = vmatprep.subr.mxu0 0.0
    %1919 = vmatpush1.msra.mxu0 0.0
    %1920 = vmatprep.subr.mxu0 0.0
    %1921 = vmatpush1.msra.mxu0 0.0
    %1922 = vmatprep.subr.mxu0 0.0
    %1923 = vmatpush1.msra.mxu0 0.0
    %1924 = vmatprep.subr.mxu0 0.0
    %1925 = vmatpush1.msra.mxu0 0.0
    %1926 = vmatprep.subr.mxu0 0.0
    %1927 = vmatpush1.msra.mxu0 0.0
    %1928 = vmatprep.subr.mxu0 0.0
    %1929 = vmatpush1.msra.mxu0 0.0
    %1930 = vmatprep.subr.mxu0 0.0
    %1931 = vmatpush1.msra.mxu0 0.0
    %1932 = vmatprep.mubr.f32.mxu0 0.0
    %1933 = vmatmul.mubr.f32.gmra.mrb[0].mxu0 %v1863
    %v1934 = vpop.f32.mrb[0].mxu0
    %v1935 = vadd.f32 0.0, %v1934
    %v1936 = vpop.f32.mrb[0].mxu0
    %1937 = vmatprep.mubr.f32.mxu0 0.0
    %1938 = vmatmul.mubr.f32.gmra.mrb[0].mxu0 %v1866
    %v1939 = vpop.f32.mrb[0].mxu0
    %v1940 = vadd.f32 0.0, %v1939
    %v1941 = vpop.f32.mrb[0].mxu0
    %1942 = vdwg.mxu0
    %v1943 = vadd.f32 %v1844, %v1935
    %v1944 = vadd.f32 %v1849, %v1940
    %v1945 = vmul.f32 %v1568, %v1669
    %v1946 = vmul.f32 %v1644, %v1669
    %v1947 = vround.ne.pseudo %v1945
    %v1948 = vround.ne.pseudo %v1946
    %v1949 = vmax.f32 %v1947, -256.0
    %v1950 = vmax.f32 %v1948, -256.0
    %v1951 = vmin.f32 %v1949, 255.0
    %v1952 = vmin.f32 %v1950, 255.0
    %v1953 = vmul.f32 %v1951, %v1668
    %v1954 = vmul.f32 %v1952, %v1668
    %v1956 = vsel %vm270, %v1953, 0
    %v1959 = vsel %vm270, %v1954, 0
    %1961 = vmatprep.subr.mxu0 0.0
    %1962 = vmatpush1.msra.mxu0 %v266
    %1963 = vmatprep.subr.mxu0 0.0
    %1964 = vmatpush1.msra.mxu0 0.0
    %1965 = vmatprep.subr.mxu0 0.0
    %1966 = vmatpush1.msra.mxu0 0.0
    %1967 = vmatprep.subr.mxu0 0.0
    %1968 = vmatpush1.msra.mxu0 0.0
    %1969 = vmatprep.subr.mxu0 0.0
    %1970 = vmatpush1.msra.mxu0 0.0
    %1971 = vmatprep.subr.mxu0 0.0
    %1972 = vmatpush1.msra.mxu0 0.0
    %1973 = vmatprep.subr.mxu0 0.0
    %1974 = vmatpush1.msra.mxu0 0.0
    %1975 = vmatprep.subr.mxu0 0.0
    %1976 = vmatpush1.msra.mxu0 0.0
    %1977 = vmatprep.subr.mxu0 0.0
    %1978 = vmatpush1.msra.mxu0 0.0
    %1979 = vmatprep.subr.mxu0 0.0
    %1980 = vmatpush1.msra.mxu0 0.0
    %1981 = vmatprep.subr.mxu0 0.0
    %1982 = vmatpush1.msra.mxu0 0.0
    %1983 = vmatprep.subr.mxu0 0.0
    %1984 = vmatpush1.msra.mxu0 0.0
    %1985 = vmatprep.subr.mxu0 0.0
    %1986 = vmatpush1.msra.mxu0 0.0
    %1987 = vmatprep.subr.mxu0 0.0
    %1988 = vmatpush1.msra.mxu0 0.0
    %1989 = vmatprep.subr.mxu0 0.0
    %1990 = vmatpush1.msra.mxu0 0.0
    %1991 = vmatprep.subr.mxu0 0.0
    %1992 = vmatpush1.msra.mxu0 0.0
    %1993 = vmatprep.subr.mxu0 0.0
    %1994 = vmatpush1.msra.mxu0 0.0
    %1995 = vmatprep.subr.mxu0 0.0
    %1996 = vmatpush1.msra.mxu0 0.0
    %1997 = vmatprep.subr.mxu0 0.0
    %1998 = vmatpush1.msra.mxu0 0.0
    %1999 = vmatprep.subr.mxu0 0.0
    %2000 = vmatpush1.msra.mxu0 0.0
    %2001 = vmatprep.subr.mxu0 0.0
    %2002 = vmatpush1.msra.mxu0 0.0
    %2003 = vmatprep.subr.mxu0 0.0
    %2004 = vmatpush1.msra.mxu0 0.0
    %2005 = vmatprep.subr.mxu0 0.0
    %2006 = vmatpush1.msra.mxu0 0.0
    %2007 = vmatprep.subr.mxu0 0.0
    %2008 = vmatpush1.msra.mxu0 0.0
    %2009 = vmatprep.subr.mxu0 0.0
    %2010 = vmatpush1.msra.mxu0 0.0
    %2011 = vmatprep.subr.mxu0 0.0
    %2012 = vmatpush1.msra.mxu0 0.0
    %2013 = vmatprep.subr.mxu0 0.0
    %2014 = vmatpush1.msra.mxu0 0.0
    %2015 = vmatprep.subr.mxu0 0.0
    %2016 = vmatpush1.msra.mxu0 0.0
    %2017 = vmatprep.subr.mxu0 0.0
    %2018 = vmatpush1.msra.mxu0 0.0
    %2019 = vmatprep.subr.mxu0 0.0
    %2020 = vmatpush1.msra.mxu0 0.0
    %2021 = vmatprep.subr.mxu0 0.0
    %2022 = vmatpush1.msra.mxu0 0.0
    %2023 = vmatprep.subr.mxu0 0.0
    %2024 = vmatpush1.msra.mxu0 0.0
    %2025 = vmatprep.mubr.f32.mxu0 0.0
    %2026 = vmatmul.mubr.f32.gmra.mrb[0].mxu0 %v1956
    %v2027 = vpop.f32.mrb[0].mxu0
    %v2028 = vadd.f32 0.0, %v2027
    %v2029 = vpop.f32.mrb[0].mxu0
    %2030 = vmatprep.mubr.f32.mxu0 0.0
    %2031 = vmatmul.mubr.f32.gmra.mrb[0].mxu0 %v1959
    %v2032 = vpop.f32.mrb[0].mxu0
    %v2033 = vadd.f32 0.0, %v2032
    %v2034 = vpop.f32.mrb[0].mxu0
    %2035 = vdwg.mxu0
    %v2036 = vadd.f32 %v1943, %v2028
    %v2037 = vadd.f32 %v1944, %v2033
    %v2038 = vld [vmem:[%s5] sm:$0x1]
    %v2040 = vlaneseq
    %v2041 = vshrl.u32 %v2040, 7
    %v2042 = vsub.s32 0, %v2041
    %v2043 = vrot.slane %v2038, %v2042
    %v2045 = vadd.f32 %v2036, %v2043
    %v2046 = vadd.f32 %v2037, %v2043
    %v2047 = vadd.f32 %v76, %v2045
    %v2048 = vadd.f32 %v77, %v2046
    %v2049 = vld [vmem:[%s8] sm:$0x1]
    %v2050 = vld [vmem:[%s9] sm:$0x1]
    %v2051 = vsel %vm82, %v2047, 0.0
    %2052 = vadd.xlane.f32.xlu0 %v2051
    %v2053 = vpop.xlane.xlu0 %2052
    %v2054 = vsel %vm82, %v2048, 0.0
    %2055 = vadd.xlane.f32.xlu0 %v2054
    %v2056 = vpop.xlane.xlu0 %2055
    %v2057 = vmul.f32 %v2053, 0.03125
    %v2058 = vmul.f32 %v2056, 0.03125
    %v2059 = vsub.f32 %v2047, %v2057
    %v2060 = vsub.f32 %v2048, %v2058
    %v2061 = vmul.f32 %v2059, %v2059
    %v2062 = vmul.f32 %v2060, %v2060
    %v2063 = vsel %vm82, %v2061, 0.0
    %2064 = vadd.xlane.f32.xlu0 %v2063
    %v2065 = vpop.xlane.xlu0 %2064
    %v2066 = vsel %vm82, %v2062, 0.0
    %2067 = vadd.xlane.f32.xlu0 %v2066
    %v2068 = vpop.xlane.xlu0 %2067
    %v2069 = vmul.f32 %v2065, 0.032258064
    %v2070 = vmul.f32 %v2068, 0.032258064
    %v2071 = vrsqrt.pop %v2069
    %v2072 = vmul.f32 %v2069, %v2071
    %vm2073 = vcmp.eq.f32.partialorder %v2069, inf
    %v2074 = vsel %vm2073, %v2069, %v2072
    %vm2075 = vcmp.eq.f32.partialorder %v2069, 0.0
    %v2076 = vand.u32 %v2069, 2147483648
    %v2077 = vsel %vm2075, %v2076, %v2074
    %v2078 = vrsqrt.pop %v2070
    %v2079 = vmul.f32 %v2070, %v2078
    %vm2080 = vcmp.eq.f32.partialorder %v2070, inf
    %v2081 = vsel %vm2080, %v2070, %v2079
    %vm2082 = vcmp.eq.f32.partialorder %v2070, 0.0
    %v2083 = vand.u32 %v2070, 2147483648
    %v2084 = vsel %vm2082, %v2083, %v2081
    %v2085 = vadd.f32 %v2077, 1e-06
    %v2086 = vadd.f32 %v2084, 1e-06
    %v2087 = vrcp.pop %v2085
    %v2088 = vrcp.pop %v2086
    %v2090 = vlaneseq
    %v2091 = vshrl.u32 %v2090, 7
    %v2092 = vsub.s32 0, %v2091
    %v2093 = vrot.slane %v2049, %v2092
    %v2095 = vmul.f32 %v2093, %v2059
    %v2096 = vmul.f32 %v2093, %v2060
    %v2097 = vmul.f32 %v2095, %v2087
    %v2098 = vmul.f32 %v2096, %v2088
    %v2100 = vlaneseq
    %v2101 = vshrl.u32 %v2100, 7
    %v2102 = vsub.s32 0, %v2101
    %v2103 = vrot.slane %v2050, %v2102
    %v2105 = vadd.f32 %v2097, %v2103
    %v2106 = vadd.f32 %v2098, %v2103
    %v2107 = vand.u32 2147483647, %v2105
    %v2108 = vand.u32 2147483647, %v2106
    %v2109 = vsel %vm82, %v2107, -inf
    %v2110 = vsel %vm82, %v2108, -inf
    %v2111 = vmax.f32 %v2109, %v2110
    %2112 = vmax.xlane.f32.xlu0 %v2111
    %v2113 = vpop.xlane.xlu0 %2112
    %v2114 = vrot.slane %v2113, 4
    %v2115 = vmax.f32 %v2113, %v2114
    %v2116 = vrot.slane %v2115, 2
    %v2117 = vmax.f32 %v2115, %v2116
    %v2118 = vrot.slane %v2117, 1
    %v2119 = vmax.f32 %v2117, %v2118
    %s2120 = vtos %v2119
    %s2121 = smul.f32 %s2120, 2.0
    %v2122 = vrcp.pop 511.0
    %s2123 = vtos %v2122
    %s2124 = smul.f32 %s2121, %s2123
    %p2125 = scmp.eq.f32.partialorder %s2124, 0.0
    %s2126 = scalar_select %p2125, 1e-05, %s2124
    %v2127 = vstv %s2126
    %v2128 = vrcp.pop %v2127
    %v2129 = vmul.f32 %v2105, %v2128
    %v2130 = vmul.f32 %v2106, %v2128
    %v2131 = vround.ne.pseudo %v2129
    %v2132 = vround.ne.pseudo %v2130
    %v2133 = vmax.f32 %v2131, -256.0
    %v2134 = vmax.f32 %v2132, -256.0
    %v2135 = vmin.f32 %v2133, 255.0
    %v2136 = vmin.f32 %v2134, 255.0
    %v2137 = vmul.f32 %v2135, %v2127
    %v2138 = vmul.f32 %v2136, %v2127
    %v2139 = vld [vmem:[%s10] sm:$0xff]
    %v2140 = vld [vmem:[%s10 + $0x8] sm:$0xff]
    %v2141 = vld [vmem:[%s10 + $0x10] sm:$0xff]
    %v2142 = vld [vmem:[%s10 + $0x18] sm:$0xff]
    %v2143 = vld [vmem:[%s11] sm:$0x1]
    %v2145 = vlaneseq
    %v2146 = vshrl.u32 %v2145, 7
    %v2147 = vsub.s32 0, %v2146
    %v2148 = vrot.slane %v2143, %v2147
    %v2151 = vsel %vm82, %v2137, 0
    %v2154 = vsel %vm82, %v2138, 0
    %2156 = vmatprep.subr.mxu0 0.0
    %2157 = vmatpush1.msra.mxu0 %v2139
    %2158 = vmatprep.subr.mxu0 0.0
    %2159 = vmatpush1.msra.mxu0 %v2140
    %2160 = vmatprep.subr.mxu0 0.0
    %2161 = vmatpush1.msra.mxu0 %v2141
    %2162 = vmatprep.subr.mxu0 0.0
    %2163 = vmatpush1.msra.mxu0 %v2142
    %2164 = vmatprep.subr.mxu0 0.0
    %2165 = vmatpush1.msra.mxu0 0.0
    %2166 = vmatprep.subr.mxu0 0.0
    %2167 = vmatpush1.msra.mxu0 0.0
    %2168 = vmatprep.subr.mxu0 0.0
    %2169 = vmatpush1.msra.mxu0 0.0
    %2170 = vmatprep.subr.mxu0 0.0
    %2171 = vmatpush1.msra.mxu0 0.0
    %2172 = vmatprep.subr.mxu0 0.0
    %2173 = vmatpush1.msra.mxu0 0.0
    %2174 = vmatprep.subr.mxu0 0.0
    %2175 = vmatpush1.msra.mxu0 0.0
    %2176 = vmatprep.subr.mxu0 0.0
    %2177 = vmatpush1.msra.mxu0 0.0
    %2178 = vmatprep.subr.mxu0 0.0
    %2179 = vmatpush1.msra.mxu0 0.0
    %2180 = vmatprep.subr.mxu0 0.0
    %2181 = vmatpush1.msra.mxu0 0.0
    %2182 = vmatprep.subr.mxu0 0.0
    %2183 = vmatpush1.msra.mxu0 0.0
    %2184 = vmatprep.subr.mxu0 0.0
    %2185 = vmatpush1.msra.mxu0 0.0
    %2186 = vmatprep.subr.mxu0 0.0
    %2187 = vmatpush1.msra.mxu0 0.0
    %2188 = vmatprep.subr.mxu0 0.0
    %2189 = vmatpush1.msra.mxu0 0.0
    %2190 = vmatprep.subr.mxu0 0.0
    %2191 = vmatpush1.msra.mxu0 0.0
    %2192 = vmatprep.subr.mxu0 0.0
    %2193 = vmatpush1.msra.mxu0 0.0
    %2194 = vmatprep.subr.mxu0 0.0
    %2195 = vmatpush1.msra.mxu0 0.0
    %2196 = vmatprep.subr.mxu0 0.0
    %2197 = vmatpush1.msra.mxu0 0.0
    %2198 = vmatprep.subr.mxu0 0.0
    %2199 = vmatpush1.msra.mxu0 0.0
    %2200 = vmatprep.subr.mxu0 0.0
    %2201 = vmatpush1.msra.mxu0 0.0
    %2202 = vmatprep.subr.mxu0 0.0
    %2203 = vmatpush1.msra.mxu0 0.0
    %2204 = vmatprep.subr.mxu0 0.0
    %2205 = vmatpush1.msra.mxu0 0.0
    %2206 = vmatprep.subr.mxu0 0.0
    %2207 = vmatpush1.msra.mxu0 0.0
    %2208 = vmatprep.subr.mxu0 0.0
    %2209 = vmatpush1.msra.mxu0 0.0
    %2210 = vmatprep.subr.mxu0 0.0
    %2211 = vmatpush1.msra.mxu0 0.0
    %2212 = vmatprep.subr.mxu0 0.0
    %2213 = vmatpush1.msra.mxu0 0.0
    %2214 = vmatprep.subr.mxu0 0.0
    %2215 = vmatpush1.msra.mxu0 0.0
    %2216 = vmatprep.subr.mxu0 0.0
    %2217 = vmatpush1.msra.mxu0 0.0
    %2218 = vmatprep.subr.mxu0 0.0
    %2219 = vmatpush1.msra.mxu0 0.0
    %2220 = vmatprep.mubr.f32.mxu0 0.0
    %2221 = vmatmul.mubr.f32.gmra.mrb[0].mxu0 %v2151
    %v2222 = vpop.f32.mrb[0].mxu0
    %v2223 = vadd.f32 %v2148, %v2222
    %v2224 = vpop.f32.mrb[0].mxu0
    %2225 = vmatprep.mubr.f32.mxu0 0.0
    %2226 = vmatmul.mubr.f32.gmra.mrb[0].mxu0 %v2154
    %v2227 = vpop.f32.mrb[0].mxu0
    %v2228 = vadd.f32 %v2148, %v2227
    %v2229 = vpop.f32.mrb[0].mxu0
    %2230 = vdwg.mxu0
    %v2231 = vmul.f32 %v2223, 0.5
    %v2232 = vmul.f32 %v2228, 0.5
    %v2233 = vmul.f32 %v2223, %v2223
    %v2234 = vmul.f32 %v2228, %v2228
    %v2235 = vmul.f32 %v2223, %v2233
    %v2236 = vmul.f32 %v2228, %v2234
    %v2237 = vmul.f32 %v2235, 0.044715
    %v2238 = vmul.f32 %v2236, 0.044715
    %v2239 = vadd.f32 %v2223, %v2237
    %v2240 = vadd.f32 %v2228, %v2238
    %v2241 = vmul.f32 %v2239, 0.7978846
    %v2242 = vmul.f32 %v2240, 0.7978846
    %v2243 = vtanh.pop %v2241
    %v2244 = vtanh.pop %v2242
    %v2245 = vadd.f32 %v2243, 1.0
    %v2246 = vadd.f32 %v2244, 1.0
    %v2247 = vmul.f32 %v2231, %v2245
    %v2248 = vmul.f32 %v2232, %v2246
    %v2249 = vld [vmem:[%s12] sm:$0xff]
    %v2250 = vld [vmem:[%s12 + $0x8] sm:$0xff]
    %v2251 = vld [vmem:[%s12 + $0x10] sm:$0xff]
    %v2252 = vld [vmem:[%s12 + $0x18] sm:$0xff]
    %v2253 = vld [vmem:[%s12 + $0x20] sm:$0xff]
    %v2254 = vld [vmem:[%s12 + $0x28] sm:$0xff]
    %v2255 = vld [vmem:[%s12 + $0x30] sm:$0xff]
    %v2256 = vld [vmem:[%s12 + $0x38] sm:$0xff]
    %v2257 = vld [vmem:[%s13] sm:$0x1]
    %v2259 = vlaneseq
    %v2260 = vshrl.u32 %v2259, 7
    %v2261 = vsub.s32 0, %v2260
    %v2262 = vrot.slane %v2257, %v2261
    %vm2264 = vcmask 523264
    %v2266 = vsel %vm2264, %v2247, 0
    %v2269 = vsel %vm2264, %v2248, 0
    %2271 = vmatprep.subr.mxu0 0.0
    %2272 = vmatpush1.msra.mxu0 %v2249
    %2273 = vmatprep.subr.mxu0 0.0
    %2274 = vmatpush1.msra.mxu0 %v2250
    %2275 = vmatprep.subr.mxu0 0.0
    %2276 = vmatpush1.msra.mxu0 %v2251
    %2277 = vmatprep.subr.mxu0 0.0
    %2278 = vmatpush1.msra.mxu0 %v2252
    %2279 = vmatprep.subr.mxu0 0.0
    %2280 = vmatpush1.msra.mxu0 %v2253
    %2281 = vmatprep.subr.mxu0 0.0
    %2282 = vmatpush1.msra.mxu0 %v2254
    %2283 = vmatprep.subr.mxu0 0.0
    %2284 = vmatpush1.msra.mxu0 %v2255
    %2285 = vmatprep.subr.mxu0 0.0
    %2286 = vmatpush1.msra.mxu0 %v2256
    %2287 = vmatprep.subr.mxu0 0.0
    %2288 = vmatpush1.msra.mxu0 0.0
    %2289 = vmatprep.subr.mxu0 0.0
    %2290 = vmatpush1.msra.mxu0 0.0
    %2291 = vmatprep.subr.mxu0 0.0
    %2292 = vmatpush1.msra.mxu0 0.0
    %2293 = vmatprep.subr.mxu0 0.0
    %2294 = vmatpush1.msra.mxu0 0.0
    %2295 = vmatprep.subr.mxu0 0.0
    %2296 = vmatpush1.msra.mxu0 0.0
    %2297 = vmatprep.subr.mxu0 0.0
    %2298 = vmatpush1.msra.mxu0 0.0
    %2299 = vmatprep.subr.mxu0 0.0
    %2300 = vmatpush1.msra.mxu0 0.0
    %2301 = vmatprep.subr.mxu0 0.0
    %2302 = vmatpush1.msra.mxu0 0.0
    %2303 = vmatprep.subr.mxu0 0.0
    %2304 = vmatpush1.msra.mxu0 0.0
    %2305 = vmatprep.subr.mxu0 0.0
    %2306 = vmatpush1.msra.mxu0 0.0
    %2307 = vmatprep.subr.mxu0 0.0
    %2308 = vmatpush1.msra.mxu0 0.0
    %2309 = vmatprep.subr.mxu0 0.0
    %2310 = vmatpush1.msra.mxu0 0.0
    %2311 = vmatprep.subr.mxu0 0.0
    %2312 = vmatpush1.msra.mxu0 0.0
    %2313 = vmatprep.subr.mxu0 0.0
    %2314 = vmatpush1.msra.mxu0 0.0
    %2315 = vmatprep.subr.mxu0 0.0
    %2316 = vmatpush1.msra.mxu0 0.0
    %2317 = vmatprep.subr.mxu0 0.0
    %2318 = vmatpush1.msra.mxu0 0.0
    %2319 = vmatprep.subr.mxu0 0.0
    %2320 = vmatpush1.msra.mxu0 0.0
    %2321 = vmatprep.subr.mxu0 0.0
    %2322 = vmatpush1.msra.mxu0 0.0
    %2323 = vmatprep.subr.mxu0 0.0
    %2324 = vmatpush1.msra.mxu0 0.0
    %2325 = vmatprep.subr.mxu0 0.0
    %2326 = vmatpush1.msra.mxu0 0.0
    %2327 = vmatprep.subr.mxu0 0.0
    %2328 = vmatpush1.msra.mxu0 0.0
    %2329 = vmatprep.subr.mxu0 0.0
    %2330 = vmatpush1.msra.mxu0 0.0
    %2331 = vmatprep.subr.mxu0 0.0
    %2332 = vmatpush1.msra.mxu0 0.0
    %2333 = vmatprep.subr.mxu0 0.0
    %2334 = vmatpush1.msra.mxu0 0.0
    %2335 = vmatprep.mubr.f32.mxu0 0.0
    %2336 = vmatmul.mubr.f32.gmra.mrb[0].mxu0 %v2266
    %v2337 = vpop.f32.mrb[0].mxu0
    %v2338 = vadd.f32 %v2262, %v2337
    %v2339 = vpop.f32.mrb[0].mxu0
    %2340 = vmatprep.mubr.f32.mxu0 0.0
    %2341 = vmatmul.mubr.f32.gmra.mrb[0].mxu0 %v2269
    %v2342 = vpop.f32.mrb[0].mxu0
    %v2343 = vadd.f32 %v2262, %v2342
    %v2344 = vpop.f32.mrb[0].mxu0
    %2345 = vdwg.mxu0
    %v2346 = vand.u32 2147483647, %v2338
    %v2347 = vand.u32 2147483647, %v2343
    %v2348 = vsel %vm82, %v2346, -inf
    %v2349 = vsel %vm82, %v2347, -inf
    %v2350 = vmax.f32 %v2348, %v2349
    %2351 = vmax.xlane.f32.xlu0 %v2350
    %v2352 = vpop.xlane.xlu0 %2351
    %v2353 = vrot.slane %v2352, 4
    %v2354 = vmax.f32 %v2352, %v2353
    %v2355 = vrot.slane %v2354, 2
    %v2356 = vmax.f32 %v2354, %v2355
    %v2357 = vrot.slane %v2356, 1
    %v2358 = vmax.f32 %v2356, %v2357
    %s2359 = vtos %v2358
    %s2360 = smul.f32 %s2359, 2.0
    %v2361 = vrcp.pop 511.0
    %s2362 = vtos %v2361
    %s2363 = smul.f32 %s2360, %s2362
    %p2364 = scmp.eq.f32.partialorder %s2363, 0.0
    %s2365 = scalar_select %p2364, 1e-05, %s2363
    %v2366 = vstv %s2365
    %v2367 = vrcp.pop %v2366
    %v2368 = vmul.f32 %v2338, %v2367
    %v2369 = vmul.f32 %v2343, %v2367
    %v2370 = vround.ne.pseudo %v2368
    %v2371 = vround.ne.pseudo %v2369
    %v2372 = vmax.f32 %v2370, -256.0
    %v2373 = vmax.f32 %v2371, -256.0
    %v2374 = vmin.f32 %v2372, 255.0
    %v2375 = vmin.f32 %v2373, 255.0
    %v2376 = vmul.f32 %v2374, %v2366
    %v2377 = vmul.f32 %v2375, %v2366
    %v2378 = vadd.f32 %v2047, %v2376
    %v2379 = vadd.f32 %v2048, %v2377
    %2380 = vst.msk [vmem:[#allocation7] sm:$0xff] %vm82, %v2378
    %2381 = vst.msk [vmem:[#allocation7 + $0x8] sm:$0xff] %vm82, %v2379
    // Predicated region
    $region66: #{tpu_custom_call.1} parent=1 // pred_check
      _
    $region67: #{tpu_custom_call.1} parent=1 // pred_check_branch
      %2383 = sbr.rel (0) target = $region69
    $region68: #{tpu_custom_call.1} parent=1 // pred_region
      %s2385 = ssub.s32 256, 256
      %2386 = vsyncadd [#allocation4], %s2385
      %s2387 = sshll.u32 [#allocation7], 4
      %s2388 = int_to_ptr.vmem [resolvable:$true] %s2387
      %2393 = dma.vmem_to_hbm [thread:$0]  %s2388, 256, %s14, [#allocation4], 128, 128, 8
    $region69: #{tpu_custom_call.1} parent=1 // pred_fallthru
      _
    // Predicated region
    $region70: #{tpu_custom_call.1} parent=1 // pred_check
      _
    $region71: #{tpu_custom_call.1} parent=1 // pred_check_branch
      %2395 = sbr.rel (0) target = $region73
    $region72: #{tpu_custom_call.1} parent=1 // pred_region
      %2396 = dma.done [#allocation4], 256
    $region73: #{tpu_custom_call.1} parent=1 // pred_fallthru
      _
    %2397 = vsyncpa [#allocation3], 1
    %2398 = vsyncpa [#allocation6], 1
    %2399 = vsyncpa [#allocation4], 1

</llo_original>
